<compile_context>
chip_gen: v7x
topology: tpu7x:2x2x1
jax: 0.10.0
libtpu: 0.0.40
codegen_flags: <defaults>
</compile_context>

<pallas_src>
import jax
import jax.numpy as jnp
from jax.experimental import pallas as pl
from jax.experimental.pallas import tpu as pltpu


def mlp_kernel(x_ref, w1_ref, b1_ref, w2_ref, b2_ref, o_ref):
    # Layer 1: cast the f32 x tile to the MXU dtype in-register (no wrapper
    # astype pass over x in HBM); bf16 matmul with f32 accumulation.
    x = x_ref[...].astype(w1_ref.dtype)
    h = jnp.dot(x, w1_ref[...], preferred_element_type=jnp.float32)
    h = jnp.maximum(h + b1_ref[...], 0.0)          # bias + ReLU in f32 on the VPU
    # Layer 2: feed the ReLU output straight into the second matmul (no VMEM
    # scratch bounce); bias add in f32, single cast on the final store.
    o = jnp.dot(h.astype(w2_ref.dtype), w2_ref[...],
                preferred_element_type=jnp.float32)
    o_ref[...] = (o + b2_ref[...]).astype(o_ref.dtype)


def _round_up(x, m):
    return ((x + m - 1) // m) * m


def _choose_tm(B, *, cap=256, align=16):
    """Batch tile: prefer exact (zero-waste) tiles, keep >=2 grid steps for v7x."""
    tm = None
    upper = min(cap, B)
    upper -= upper % align
    for cand in range(upper, align - 1, -align):   # largest aligned exact divisor
        if B % cand == 0:
            tm = cand
            break
    if tm is None:
        # No aligned exact divisor: take a full-cap (or batch-covering) tile and
        # let Pallas discard the OOB rows of the ragged last block.
        tm = min(cap, _round_up(B, align))
    # Ensure >=2 grid steps so dimension_semantics=("parallel",) can shard the
    # batch across both TensorCores on v7x (negligible cost on 1-TC chips).
    if pl.cdiv(B, tm) == 1 and tm >= 2 * align:
        tm = _round_up(tm // 2, align)
    return tm


def _vmem_limit_bytes(vmem_need):
    try:
        phys = pltpu.get_tpu_info().vmem_capacity_bytes
    except Exception:  # conservative fallback (v7x has 64 MiB per TC)
        phys = 64 * 1024 * 1024
    hard_cap = int(0.8 * phys)          # headroom for Mosaic internal scratch
    return int(min(max(2 * vmem_need, 32 * 1024 * 1024), hard_cap))


def prepare_mlp_params(w1, b1, w2, b2, compute_dtype=jnp.bfloat16):
    """One-time parameter prep: weights in the MXU compute dtype, biases as f32
    row vectors.  Cache the result outside the hot path so the per-call wrapper
    pays no cast passes over the weights."""
    return (w1.astype(compute_dtype), jnp.reshape(b1, (1, -1)).astype(jnp.float32),
            w2.astype(compute_dtype), jnp.reshape(b2, (1, -1)).astype(jnp.float32))


def two_layer_mlp(x, w1, b1, w2, b2, *, tm=None, out_dtype=None,
                  compute_dtype=jnp.bfloat16):
    """Fused Linear(D_in->H) -> ReLU -> Linear(H->D_out).

    x: (B, D_in) activations (any float dtype; cast to `compute_dtype` in-kernel).
    w1/b1/w2/b2: ideally pre-converted via prepare_mlp_params (no-op casts here).
    out_dtype: defaults to x.dtype; pass bf16 to halve the output writeback.
    """
    B, D_in = x.shape
    H = w1.shape[1]
    D_out = w2.shape[1]
    out_dtype = x.dtype if out_dtype is None else out_dtype

    # No-op if params were already prepared/cached via prepare_mlp_params.
    w1_c, b1_f, w2_c, b2_f = prepare_mlp_params(w1, b1, w2, b2, compute_dtype)

    if tm is None:
        tm = _choose_tm(B)
    grid = (pl.cdiv(B, tm),)   # ragged tail block handled by Pallas, no jnp.pad

    cdt = jnp.dtype(compute_dtype).itemsize
    xdt = jnp.dtype(x.dtype).itemsize
    odt = jnp.dtype(out_dtype).itemsize

    # VMEM budget: double-buffered x/out tiles + resident weights/biases, with
    # 2x headroom; capped at 0.8 * physical VMEM for this generation.
    vmem_need = (2 * tm * D_in * xdt            # x tile (double-buffered, f32)
                 + 2 * tm * D_out * odt          # out tile (double-buffered)
                 + (D_in * H + H * D_out) * cdt  # weights (grid-invariant)
                 + (H + D_out) * 4)              # biases (f32)
    vmem_limit = _vmem_limit_bytes(vmem_need)

    rows = grid[0] * tm
    cost = pl.CostEstimate(
        flops=2 * rows * (D_in * H + H * D_out),
        transcendentals=0,
        bytes_accessed=(B * D_in * xdt + B * D_out * odt
                        + (D_in * H + H * D_out) * cdt + (H + D_out) * 4),
    )

    def _run(resident):
        # Grid-invariant weights/biases: single-buffer them (no 2x VMEM
        # residency, no re-DMA across the grid).
        pm = {"pipeline_mode": pl.Buffered(1)} if resident else {}
        return pl.pallas_call(
            mlp_kernel,
            out_shape=jax.ShapeDtypeStruct((B, D_out), out_dtype),
            grid_spec=pltpu.PrefetchScalarGridSpec(
                num_scalar_prefetch=0,
                grid=grid,
                in_specs=[
                    pl.BlockSpec((tm, D_in), lambda i: (i, 0)),          # x tile
                    pl.BlockSpec((D_in, H), lambda i: (0, 0), **pm),     # W1
                    pl.BlockSpec((1, H), lambda i: (0, 0), **pm),        # b1
                    pl.BlockSpec((H, D_out), lambda i: (0, 0), **pm),    # W2
                    pl.BlockSpec((1, D_out), lambda i: (0, 0), **pm),    # b2
                ],
                out_specs=pl.BlockSpec((tm, D_out), lambda i: (i, 0)),
            ),
            compiler_params=pltpu.CompilerParams(
                dimension_semantics=("parallel",),   # batch tiles shard across TCs
                vmem_limit_bytes=vmem_limit,
            ),
            cost_estimate=cost,
        )(x, w1_c, b1_f, w2_c, b2_f)

    try:
        return _run(resident=True)
    except Exception:
        # Fallback if this Pallas build rejects Buffered(1): default buffering
        # (weights are small; correctness and a clean run take priority).
        return _run(resident=False)


if __name__ == "__main__":
    # Small shapes consistent with the module (Linear(d, 2d) -> ReLU -> Linear(2d, out)):
    # input_dim=128, hidden=256, output_dim=256.
    D_IN, D_OUT = 128, 256
    H = D_IN * 2

    key = jax.random.PRNGKey(0)
    k_x, k_w1, k_b1, k_w2, k_b2 = jax.random.split(key, 5)

    # Deterministic, PyTorch-Linear-like scaled init (shapes: (in, out)).
    w1 = jax.random.uniform(k_w1, (D_IN, H), jnp.float32, -1.0, 1.0) / jnp.sqrt(D_IN)
    b1 = jax.random.uniform(k_b1, (H,), jnp.float32, -1.0, 1.0) / jnp.sqrt(D_IN)
    w2 = jax.random.uniform(k_w2, (H, D_OUT), jnp.float32, -1.0, 1.0) / jnp.sqrt(H)
    b2 = jax.random.uniform(k_b2, (D_OUT,), jnp.float32, -1.0, 1.0) / jnp.sqrt(H)

    # One-time parameter preparation (cache this in real use).
    params = prepare_mlp_params(w1, b1, w2, b2)

    def ref_fp32(x):
        h = jnp.maximum(x @ w1 + b1, 0.0)
        return h @ w2 + b2

    def ref_kernel_math(x):  # mirrors bf16-operand / f32-accumulate kernel math
        c = jnp.bfloat16
        h = jnp.maximum(
            jnp.dot(x.astype(c), w1.astype(c), preferred_element_type=jnp.float32) + b1,
            0.0)
        return jnp.dot(h.astype(c), w2.astype(c),
                       preferred_element_type=jnp.float32) + b2

    # B=384: two exact 192-row tiles (zero tail waste). B=100: ragged tail path.
    for B in (384, 100):
        x = jax.random.normal(jax.random.fold_in(k_x, B), (B, D_IN), jnp.float32)
        out = jax.block_until_ready(two_layer_mlp(x, *params))
        assert out.shape == (B, D_OUT)

        ref_k = ref_kernel_math(x)
        err_k = float(jnp.max(jnp.abs(out - ref_k)))
        assert jnp.allclose(out, ref_k.astype(out.dtype), atol=2e-3, rtol=2e-3), err_k

        ref_f = ref_fp32(x)   # fp32 PyTorch-equivalent reference (looser: bf16 MXU ops)
        err_f = float(jnp.max(jnp.abs(out - ref_f)))
        assert jnp.allclose(out, ref_f.astype(out.dtype), atol=5e-2, rtol=5e-2), err_f

    print("KERNEL_OK")
</pallas_src>

<mosaic_0001>
module attributes {stable_mosaic.version = 11 : i64} {
  func.func @mlp_kernel(%arg0: i32, %arg1: memref<192x128xf32, #tpu.memory_space<vmem>>, %arg2: memref<128x256xbf16, #tpu.memory_space<vmem>>, %arg3: memref<1x256xf32, #tpu.memory_space<vmem>>, %arg4: memref<256x256xbf16, #tpu.memory_space<vmem>>, %arg5: memref<1x256xf32, #tpu.memory_space<vmem>>, %arg6: memref<192x256xf32, #tpu.memory_space<vmem>>) attributes {dimension_semantics = [#tpu.dimension_semantics<parallel>], iteration_bounds = array<i64: 2>, scalar_prefetch = 0 : i64, scratch_operands = 0 : i64, tpu.core_type = #tpu.core_type<tc>, window_params = [{transform_indices = @transform_0, window_bounds = array<i64: 192, 128>}, {pipeline_mode = #tpu.pipeline_mode<synchronous>, transform_indices = @transform_1, window_bounds = array<i64: 128, 256>}, {pipeline_mode = #tpu.pipeline_mode<synchronous>, transform_indices = @transform_2, window_bounds = array<i64: 1, 256>}, {pipeline_mode = #tpu.pipeline_mode<synchronous>, transform_indices = @transform_3, window_bounds = array<i64: 256, 256>}, {pipeline_mode = #tpu.pipeline_mode<synchronous>, transform_indices = @transform_4, window_bounds = array<i64: 1, 256>}, {transform_indices = @transform_5, window_bounds = array<i64: 192, 256>}]} {
    %c0 = arith.constant 0 : index
    %c0_0 = arith.constant 0 : index
    %0 = vector.load %arg1[%c0, %c0_0] : memref<192x128xf32, #tpu.memory_space<vmem>>, vector<192x128xf32>
    %1 = arith.truncf %0 : vector<192x128xf32> to vector<192x128xbf16>
    %c0_1 = arith.constant 0 : index
    %c0_2 = arith.constant 0 : index
    %2 = vector.load %arg2[%c0_1, %c0_2] : memref<128x256xbf16, #tpu.memory_space<vmem>>, vector<128x256xbf16>
    %cst = arith.constant dense<0.000000e+00> : vector<192x256xf32>
    %3 = tpu.matmul %1, %2, %cst {dimension_numbers = #tpu.dot_dimension_numbers<[1], [0], [0], [1], [0, 0, 1, 1], [], []>} : vector<192x128xbf16>, vector<128x256xbf16>, vector<192x256xf32> -> vector<192x256xf32>
    %c0_3 = arith.constant 0 : index
    %c0_4 = arith.constant 0 : index
    %4 = vector.load %arg3[%c0_3, %c0_4] : memref<1x256xf32, #tpu.memory_space<vmem>>, vector<1x256xf32>
    %5 = vector.broadcast %4 : vector<1x256xf32> to vector<192x256xf32>
    %6 = arith.addf %3, %5 : vector<192x256xf32>
    %cst_5 = arith.constant 0.000000e+00 : f32
    %7 = vector.broadcast %cst_5 : f32 to vector<192x256xf32>
    %8 = arith.maximumf %6, %7 : vector<192x256xf32>
    %9 = arith.truncf %8 : vector<192x256xf32> to vector<192x256xbf16>
    %c0_6 = arith.constant 0 : index
    %c0_7 = arith.constant 0 : index
    %10 = vector.load %arg4[%c0_6, %c0_7] : memref<256x256xbf16, #tpu.memory_space<vmem>>, vector<256x256xbf16>
    %cst_8 = arith.constant dense<0.000000e+00> : vector<192x256xf32>
    %11 = tpu.matmul %9, %10, %cst_8 {dimension_numbers = #tpu.dot_dimension_numbers<[1], [0], [0], [1], [0, 0, 1, 1], [], []>} : vector<192x256xbf16>, vector<256x256xbf16>, vector<192x256xf32> -> vector<192x256xf32>
    %c0_9 = arith.constant 0 : index
    %c0_10 = arith.constant 0 : index
    %12 = vector.load %arg5[%c0_9, %c0_10] : memref<1x256xf32, #tpu.memory_space<vmem>>, vector<1x256xf32>
    %13 = vector.broadcast %12 : vector<1x256xf32> to vector<192x256xf32>
    %14 = arith.addf %11, %13 : vector<192x256xf32>
    %c0_11 = arith.constant 0 : index
    %c0_12 = arith.constant 0 : index
    %15 = vector.load %arg6[%c0_11, %c0_12] : memref<192x256xf32, #tpu.memory_space<vmem>>, vector<192x256xf32>
    tpu.vector_store %arg6[%c0_11, %c0_12], %14 {strides = array<i32>} : memref<192x256xf32, #tpu.memory_space<vmem>>, vector<192x256xf32>,
    return
  }
  func.func @transform_0(%arg0: i32) -> (i32, i32) {
    %c0_i32 = arith.constant 0 : i32
    %c0_i32_0 = arith.constant 0 : i32
    return %arg0, %c0_i32 : i32, i32
  }
  func.func @transform_1(%arg0: i32) -> (i32, i32) {
    %c0_i32 = arith.constant 0 : i32
    %c0_i32_0 = arith.constant 0 : i32
    %c0_i32_1 = arith.constant 0 : i32
    return %c0_i32, %c0_i32_0 : i32, i32
  }
  func.func @transform_2(%arg0: i32) -> (i32, i32) {
    %c0_i32 = arith.constant 0 : i32
    %c0_i32_0 = arith.constant 0 : i32
    %c0_i32_1 = arith.constant 0 : i32
    return %c0_i32, %c0_i32_0 : i32, i32
  }
  func.func @transform_3(%arg0: i32) -> (i32, i32) {
    %c0_i32 = arith.constant 0 : i32
    %c0_i32_0 = arith.constant 0 : i32
    %c0_i32_1 = arith.constant 0 : i32
    return %c0_i32, %c0_i32_0 : i32, i32
  }
  func.func @transform_4(%arg0: i32) -> (i32, i32) {
    %c0_i32 = arith.constant 0 : i32
    %c0_i32_0 = arith.constant 0 : i32
    %c0_i32_1 = arith.constant 0 : i32
    return %c0_i32, %c0_i32_0 : i32, i32
  }
  func.func @transform_5(%arg0: i32) -> (i32, i32) {
    %c0_i32 = arith.constant 0 : i32
    %c0_i32_0 = arith.constant 0 : i32
    return %arg0, %c0_i32 : i32, i32
  }
}

module attributes {stable_mosaic.version = 11 : i64} {
  func.func @mlp_kernel(%arg0: i32, %arg1: memref<192x128xf32, #tpu.memory_space<vmem>>, %arg2: memref<128x256xbf16, #tpu.memory_space<vmem>>, %arg3: memref<1x256xf32, #tpu.memory_space<vmem>>, %arg4: memref<256x256xbf16, #tpu.memory_space<vmem>>, %arg5: memref<1x256xf32, #tpu.memory_space<vmem>>, %arg6: memref<192x256xf32, #tpu.memory_space<vmem>>) attributes {dimension_semantics = [#tpu.dimension_semantics<parallel>], iteration_bounds = array<i64: 2>, scalar_prefetch = 0 : i64, scratch_operands = 0 : i64, tpu.core_type = #tpu.core_type<tc>, window_params = [{transform_indices = @transform_0, window_bounds = array<i64: 192, 128>}, {pipeline_mode = #tpu.pipeline_mode<synchronous>, transform_indices = @transform_1, window_bounds = array<i64: 128, 256>}, {pipeline_mode = #tpu.pipeline_mode<synchronous>, transform_indices = @transform_2, window_bounds = array<i64: 1, 256>}, {pipeline_mode = #tpu.pipeline_mode<synchronous>, transform_indices = @transform_3, window_bounds = array<i64: 256, 256>}, {pipeline_mode = #tpu.pipeline_mode<synchronous>, transform_indices = @transform_4, window_bounds = array<i64: 1, 256>}, {transform_indices = @transform_5, window_bounds = array<i64: 192, 256>}]} {
    %c0 = arith.constant 0 : index
    %c0_0 = arith.constant 0 : index
    %0 = vector.load %arg1[%c0, %c0_0] : memref<192x128xf32, #tpu.memory_space<vmem>>, vector<192x128xf32>
    %1 = arith.truncf %0 : vector<192x128xf32> to vector<192x128xbf16>
    %c0_1 = arith.constant 0 : index
    %c0_2 = arith.constant 0 : index
    %2 = vector.load %arg2[%c0_1, %c0_2] : memref<128x256xbf16, #tpu.memory_space<vmem>>, vector<128x256xbf16>
    %cst = arith.constant dense<0.000000e+00> : vector<192x256xf32>
    %3 = tpu.matmul %1, %2, %cst {dimension_numbers = #tpu.dot_dimension_numbers<[1], [0], [0], [1], [0, 0, 1, 1], [], []>} : vector<192x128xbf16>, vector<128x256xbf16>, vector<192x256xf32> -> vector<192x256xf32>
    %c0_3 = arith.constant 0 : index
    %c0_4 = arith.constant 0 : index
    %4 = vector.load %arg3[%c0_3, %c0_4] : memref<1x256xf32, #tpu.memory_space<vmem>>, vector<1x256xf32>
    %5 = vector.broadcast %4 : vector<1x256xf32> to vector<192x256xf32>
    %6 = arith.addf %3, %5 : vector<192x256xf32>
    %cst_5 = arith.constant 0.000000e+00 : f32
    %7 = vector.broadcast %cst_5 : f32 to vector<192x256xf32>
    %8 = arith.maximumf %6, %7 : vector<192x256xf32>
    %9 = arith.truncf %8 : vector<192x256xf32> to vector<192x256xbf16>
    %c0_6 = arith.constant 0 : index
    %c0_7 = arith.constant 0 : index
    %10 = vector.load %arg4[%c0_6, %c0_7] : memref<256x256xbf16, #tpu.memory_space<vmem>>, vector<256x256xbf16>
    %cst_8 = arith.constant dense<0.000000e+00> : vector<192x256xf32>
    %11 = tpu.matmul %9, %10, %cst_8 {dimension_numbers = #tpu.dot_dimension_numbers<[1], [0], [0], [1], [0, 0, 1, 1], [], []>} : vector<192x256xbf16>, vector<256x256xbf16>, vector<192x256xf32> -> vector<192x256xf32>
    %c0_9 = arith.constant 0 : index
    %c0_10 = arith.constant 0 : index
    %12 = vector.load %arg5[%c0_9, %c0_10] : memref<1x256xf32, #tpu.memory_space<vmem>>, vector<1x256xf32>
    %13 = vector.broadcast %12 : vector<1x256xf32> to vector<192x256xf32>
    %14 = arith.addf %11, %13 : vector<192x256xf32>
    %c0_11 = arith.constant 0 : index
    %c0_12 = arith.constant 0 : index
    %15 = vector.load %arg6[%c0_11, %c0_12] : memref<192x256xf32, #tpu.memory_space<vmem>>, vector<192x256xf32>
    tpu.vector_store %arg6[%c0_11, %c0_12], %14 {strides = array<i32>} : memref<192x256xf32, #tpu.memory_space<vmem>>, vector<192x256xf32>,
    return
  }
  func.func @transform_0(%arg0: i32) -> (i32, i32) {
    %c0_i32 = arith.constant 0 : i32
    %c0_i32_0 = arith.constant 0 : i32
    return %arg0, %c0_i32 : i32, i32
  }
  func.func @transform_1(%arg0: i32) -> (i32, i32) {
    %c0_i32 = arith.constant 0 : i32
    %c0_i32_0 = arith.constant 0 : i32
    %c0_i32_1 = arith.constant 0 : i32
    return %c0_i32, %c0_i32_0 : i32, i32
  }
  func.func @transform_2(%arg0: i32) -> (i32, i32) {
    %c0_i32 = arith.constant 0 : i32
    %c0_i32_0 = arith.constant 0 : i32
    %c0_i32_1 = arith.constant 0 : i32
    return %c0_i32, %c0_i32_0 : i32, i32
  }
  func.func @transform_3(%arg0: i32) -> (i32, i32) {
    %c0_i32 = arith.constant 0 : i32
    %c0_i32_0 = arith.constant 0 : i32
    %c0_i32_1 = arith.constant 0 : i32
    return %c0_i32, %c0_i32_0 : i32, i32
  }
  func.func @transform_4(%arg0: i32) -> (i32, i32) {
    %c0_i32 = arith.constant 0 : i32
    %c0_i32_0 = arith.constant 0 : i32
    %c0_i32_1 = arith.constant 0 : i32
    return %c0_i32, %c0_i32_0 : i32, i32
  }
  func.func @transform_5(%arg0: i32) -> (i32, i32) {
    %c0_i32 = arith.constant 0 : i32
    %c0_i32_0 = arith.constant 0 : i32
    return %arg0, %c0_i32 : i32, i32
  }
}

</mosaic_0001>

<llo_original>
// kernel: tpu_custom_call.1
$region0: #{tpu_custom_call.1}
  #allocation0 [shape = 'u32[]', space=smem, size = 0x4, offset = 0x4, fixed_abs, tag = 'smem constant byte address 0x4 - core index']
  #allocation1 [shape = 'u32[144,128]{1,0:T(1,128)}', space=vmem, size = 0x12000, scoped, tag = 'internal scratch']
  %s0 = inlined_call_operand.hbm [shape: f32[384,128], index: 0, kind: input, shape index: {}]
  %s1 = inlined_call_operand.hbm [shape: bf16[128,256], index: 1, kind: input, shape index: {}]
  %s2 = inlined_call_operand.vmem [shape: f32[1,256], index: 2, kind: input, shape index: {}]
  %s3 = inlined_call_operand.hbm [shape: bf16[256,256], index: 3, kind: input, shape index: {}]
  %s4 = inlined_call_operand.vmem [shape: f32[1,256], index: 4, kind: input, shape index: {}]
  %s5 = inlined_call_operand.hbm [shape: f32[384,256], index: 5, kind: output, shape index: {}]
  %s6 = sld [smem:[#allocation0]]
  $region65: #{tpu_custom_call.1} parent=0
    _
  %s8 = ssub.s32 1, %s6
  %s9 = scalar_select 0, %s8, %s6
  $region1: #{tpu_custom_call.1} parent=0
    #allocation2 [shape = 'u8[196608]{0}', space=vmem, size = 0x30000, scoped, tag = 'input window, operand 0']
    #allocation3 [shape = 's32[2]{0}', space=sflag, size = 0x8, scoped, tag = 'scoped memory for tpu_custom_call.1']
    #allocation4 [shape = 's32[2]{0}', space=sflag, size = 0x8, scoped, tag = 'scoped memory for tpu_custom_call.1']
    #allocation5 [shape = 'u8[65536]{0}', space=vmem, size = 0x10000, scoped, tag = 'input window, operand 1, single buffered']
    #allocation6 [shape = 's32[1]{0}', space=sflag, size = 0x4, scoped, tag = 'scoped memory for tpu_custom_call.1']
    #allocation7 [shape = 'u8[131072]{0}', space=vmem, size = 0x20000, scoped, tag = 'input window, operand 3, single buffered']
    #allocation8 [shape = 'u8[393216]{0}', space=vmem, size = 0x60000, scoped, tag = 'output window, operand 0']
    %10 = vsyncpa [#allocation3], 0
    %s11 = scalar_lea.sflag [#allocation3], 1
    %12 = vsyncpa %s11, 0
    %13 = vsyncpa [#allocation6], 0
    %14 = vsyncpa [#allocation4], 0
    %s15 = scalar_lea.sflag [#allocation4], 1
    %16 = vsyncpa %s15, 0
    loop: start=0, step=1, limit=4
    $region2: #{tpu_custom_call.1} parent=1 // loop_pre_header
      _
    $region3: #{tpu_custom_call.1} parent=1 // loop_header
      %s18 = sphi 0, %s22
      %p19 = scmp.ge.s32.totalorder %s18, 4
      %s28 = sphi 0, %s30
      %s31 = sphi 0, %s28
      %s32 = sphi 0, %s31
      %s48 = sphi 0, %s32
      %s52 = sphi 0, %s52
      %s54 = sphi 0, %s52
      %s55 = sphi 0, %s54
      %s69 = sphi 0, %s55
      %s73 = sphi 0, %s73
      %s75 = sphi 0, %s73
      %s76 = sphi 0, %s75
      %s90 = sphi 0, %s76
      %s94 = sphi 0, %s94
      %s96 = sphi 0, %s94
      %s97 = sphi 0, %s96
      %s111 = sphi 0, %s97
      %s115 = sphi 0, %s115
      %s117 = sphi 0, %s115
      %s118 = sphi 0, %s117
      %s132 = sphi 0, %s118
      %s138 = sphi 0, %s140
      %s141 = sphi 0, %s138
      %s142 = sphi 0, %s141
      %s158 = sphi 0, %s142
    $region4: #{tpu_custom_call.1} parent=1 // loop_header_branch
      %21 = sbr.rel (%p19) target = $region8
    $region5: #{tpu_custom_call.1} parent=1 // loop_body
      %s23 = ssub.s32 %s18, 1
      %s24 = ssub.s32 %s18, 2
      %s25 = sadd.s32 %s18, 1
      %s26 = ssub.s32 %s18, %s25
      %p27 = scmp.eq.s32.totalorder %s26, 0
      %s29 = sadd.s32 %s28, 1
      %s30 = scalar_select %p27, %s28, %s29
      %p33 = pneg %p27
      %p34 = scmp.eq.s32.totalorder %s18, 1
      %p35 = por %p33, %p34
      %p36 = scmp.ne.s32.totalorder %s28, %s31
      %p37 = scmp.eq.s32.totalorder %s18, 0
      %p38 = por %p36, %p37
      %p39 = scmp.ne.s32.totalorder %s28, %s31
      %p40 = scmp.eq.s32.totalorder %s23, 1
      %p41 = por %p39, %p40
      %p42 = scmp.ne.s32.totalorder %s31, %s32
      %p43 = scmp.eq.s32.totalorder %s23, 0
      %p44 = por %p42, %p43
      %p45 = scmp.ne.s32.totalorder %s31, %s32
      %p46 = scmp.eq.s32.totalorder %s24, 1
      %p47 = por %p45, %p46
      %p49 = scmp.ne.s32.totalorder %s32, %s48
      %p50 = scmp.eq.s32.totalorder %s24, 0
      %p51 = por %p49, %p50
      %s53 = sadd.s32 %s52, 1
      %p56 = scmp.eq.s32.totalorder %s18, 1
      %p57 = scmp.ne.s32.totalorder %s52, %s54
      %p58 = scmp.eq.s32.totalorder %s18, 0
      %p59 = por %p57, %p58
      %p60 = scmp.ne.s32.totalorder %s52, %s54
      %p61 = scmp.eq.s32.totalorder %s23, 1
      %p62 = por %p60, %p61
      %p63 = scmp.ne.s32.totalorder %s54, %s55
      %p64 = scmp.eq.s32.totalorder %s23, 0
      %p65 = por %p63, %p64
      %p66 = scmp.ne.s32.totalorder %s54, %s55
      %p67 = scmp.eq.s32.totalorder %s24, 1
      %p68 = por %p66, %p67
      %p70 = scmp.ne.s32.totalorder %s55, %s69
      %p71 = scmp.eq.s32.totalorder %s24, 0
      %p72 = por %p70, %p71
      %s74 = sadd.s32 %s73, 1
      %p77 = scmp.eq.s32.totalorder %s18, 1
      %p78 = scmp.ne.s32.totalorder %s73, %s75
      %p79 = scmp.eq.s32.totalorder %s18, 0
      %p80 = por %p78, %p79
      %p81 = scmp.ne.s32.totalorder %s73, %s75
      %p82 = scmp.eq.s32.totalorder %s23, 1
      %p83 = por %p81, %p82
      %p84 = scmp.ne.s32.totalorder %s75, %s76
      %p85 = scmp.eq.s32.totalorder %s23, 0
      %p86 = por %p84, %p85
      %p87 = scmp.ne.s32.totalorder %s75, %s76
      %p88 = scmp.eq.s32.totalorder %s24, 1
      %p89 = por %p87, %p88
      %p91 = scmp.ne.s32.totalorder %s76, %s90
      %p92 = scmp.eq.s32.totalorder %s24, 0
      %p93 = por %p91, %p92
      %s95 = sadd.s32 %s94, 1
      %p98 = scmp.eq.s32.totalorder %s18, 1
      %p99 = scmp.ne.s32.totalorder %s94, %s96
      %p100 = scmp.eq.s32.totalorder %s18, 0
      %p101 = por %p99, %p100
      %p102 = scmp.ne.s32.totalorder %s94, %s96
      %p103 = scmp.eq.s32.totalorder %s23, 1
      %p104 = por %p102, %p103
      %p105 = scmp.ne.s32.totalorder %s96, %s97
      %p106 = scmp.eq.s32.totalorder %s23, 0
      %p107 = por %p105, %p106
      %p108 = scmp.ne.s32.totalorder %s96, %s97
      %p109 = scmp.eq.s32.totalorder %s24, 1
      %p110 = por %p108, %p109
      %p112 = scmp.ne.s32.totalorder %s97, %s111
      %p113 = scmp.eq.s32.totalorder %s24, 0
      %p114 = por %p112, %p113
      %s116 = sadd.s32 %s115, 1
      %p119 = scmp.eq.s32.totalorder %s18, 1
      %p120 = scmp.ne.s32.totalorder %s115, %s117
      %p121 = scmp.eq.s32.totalorder %s18, 0
      %p122 = por %p120, %p121
      %p123 = scmp.ne.s32.totalorder %s115, %s117
      %p124 = scmp.eq.s32.totalorder %s23, 1
      %p125 = por %p123, %p124
      %p126 = scmp.ne.s32.totalorder %s117, %s118
      %p127 = scmp.eq.s32.totalorder %s23, 0
      %p128 = por %p126, %p127
      %p129 = scmp.ne.s32.totalorder %s117, %s118
      %p130 = scmp.eq.s32.totalorder %s24, 1
      %p131 = por %p129, %p130
      %p133 = scmp.ne.s32.totalorder %s118, %s132
      %p134 = scmp.eq.s32.totalorder %s24, 0
      %p135 = por %p133, %p134
      %s136 = ssub.s32 %s18, %s25
      %p137 = scmp.eq.s32.totalorder %s136, 0
      %s139 = sadd.s32 %s138, 1
      %s140 = scalar_select %p137, %s138, %s139
      %p143 = pneg %p137
      %p144 = scmp.eq.s32.totalorder %s18, 1
      %p145 = por %p143, %p144
      %p146 = scmp.ne.s32.totalorder %s138, %s141
      %p147 = scmp.eq.s32.totalorder %s18, 0
      %p148 = por %p146, %p147
      %p149 = scmp.ne.s32.totalorder %s138, %s141
      %p150 = scmp.eq.s32.totalorder %s23, 1
      %p151 = por %p149, %p150
      %p152 = scmp.ne.s32.totalorder %s141, %s142
      %p153 = scmp.eq.s32.totalorder %s23, 0
      %p154 = por %p152, %p153
      %p155 = scmp.ne.s32.totalorder %s141, %s142
      %p156 = scmp.eq.s32.totalorder %s24, 1
      %p157 = por %p155, %p156
      %p159 = scmp.ne.s32.totalorder %s142, %s158
      %p160 = scmp.eq.s32.totalorder %s24, 0
      %p161 = por %p159, %p160
      %p162 = scmp.le.s32.totalorder 1, %s18
      %p163 = scmp.lt.s32.totalorder %s18, 3
      %p164 = pnand %p162, %p163
      %p165 = pneg %p164
      // Predicated region
      $region9: #{tpu_custom_call.1} parent=5 // pred_check
        _
      $region10: #{tpu_custom_call.1} parent=5 // pred_check_branch
        %167 = sbr.rel (%p164) target = $region12
      $region11: #{tpu_custom_call.1} parent=5 // pred_region
        %s168 = ssub.s32 %s18, 1
        // Predicated region
        $region13: #{tpu_custom_call.1} parent=11 // pred_check
          %p169 = pneg %p65
        $region14: #{tpu_custom_call.1} parent=11 // pred_check_branch
          %171 = sbr.rel (%p169) target = $region16
        $region15: #{tpu_custom_call.1} parent=11 // pred_region
          %s173 = ssub.s32 2048, 2048
          %174 = vsyncadd [#allocation6], %s173
          %s175 = sshll.u32 [#allocation5], 4
          %s176 = int_to_ptr.vmem [resolvable:$true] %s175
          %181 = dma.hbm_to_vmem [thread:$0]  %s1, 2048, %s176, [#allocation6], 128, 128, 8
        $region16: #{tpu_custom_call.1} parent=11 // pred_fallthru
          _
        // Predicated region
        $region17: #{tpu_custom_call.1} parent=11 // pred_check
          %p182 = pneg %p86
        $region18: #{tpu_custom_call.1} parent=11 // pred_check_branch
          %184 = sbr.rel (%p182) target = $region20
        $region19: #{tpu_custom_call.1} parent=11 // pred_region
          _
        $region20: #{tpu_custom_call.1} parent=11 // pred_fallthru
          _
        // Predicated region
        $region21: #{tpu_custom_call.1} parent=11 // pred_check
          %p185 = pneg %p107
        $region22: #{tpu_custom_call.1} parent=11 // pred_check_branch
          %187 = sbr.rel (%p185) target = $region24
        $region23: #{tpu_custom_call.1} parent=11 // pred_region
          %s189 = ssub.s32 4096, 4096
          %190 = vsyncadd [#allocation6], %s189
          %s191 = sshll.u32 [#allocation7], 4
          %s192 = int_to_ptr.vmem [resolvable:$true] %s191
          %197 = dma.hbm_to_vmem [thread:$0]  %s3, 4096, %s192, [#allocation6], 128, 128, 8
        $region24: #{tpu_custom_call.1} parent=11 // pred_fallthru
          _
        // Predicated region
        $region25: #{tpu_custom_call.1} parent=11 // pred_check
          %p198 = pneg %p128
        $region26: #{tpu_custom_call.1} parent=11 // pred_check_branch
          %200 = sbr.rel (%p198) target = $region28
        $region27: #{tpu_custom_call.1} parent=11 // pred_region
          _
        $region28: #{tpu_custom_call.1} parent=11 // pred_fallthru
          _
      $region12: #{tpu_custom_call.1} parent=5 // pred_fallthru
        _
      %p201 = scmp.lt.s32.totalorder %s18, 2
      // Predicated region
      $region29: #{tpu_custom_call.1} parent=5 // pred_check
        %p202 = pneg %p201
      $region30: #{tpu_custom_call.1} parent=5 // pred_check_branch
        %204 = sbr.rel (%p202) target = $region32
      $region31: #{tpu_custom_call.1} parent=5 // pred_region
        // Predicated region
        $region33: #{tpu_custom_call.1} parent=31 // pred_check
          %p205 = pneg %p38
        $region34: #{tpu_custom_call.1} parent=31 // pred_check_branch
          %207 = sbr.rel (%p205) target = $region36
        $region35: #{tpu_custom_call.1} parent=31 // pred_region
          %s208 = sand.u32 %s28, 1
          %s209 = scalar_lea.sflag [#allocation3], %s208
          %s210 = sand.u32 %s28, 1
          %s211 = smul.addr %s210, 192
          %s212 = scalar_lea.vmem [#allocation2], %s211
          %s213 = smul.u32 24, %s18
          %s215 = ssub.s32 3072, 3072
          %216 = vsyncadd %s209, %s215
          %s217 = smul.addr %s213, 128
          %s218 = scalar_lea.hbm %s0, %s217
          %s219 = sshll.u32 %s212, 4
          %s220 = int_to_ptr.vmem [resolvable:$true] %s219
          %225 = dma.hbm_to_vmem [thread:$0]  %s218, 3072, %s220, %s209, 128, 128, 8
        $region36: #{tpu_custom_call.1} parent=31 // pred_fallthru
          _
      $region32: #{tpu_custom_call.1} parent=5 // pred_fallthru
        _
      %p226 = scmp.le.s32.totalorder 1, %s18
      %p227 = scmp.lt.s32.totalorder %s18, 3
      %p228 = pnand %p226, %p227
      %p229 = pneg %p228
      // Predicated region
      $region37: #{tpu_custom_call.1} parent=5 // pred_check
        _
      $region38: #{tpu_custom_call.1} parent=5 // pred_check_branch
        %231 = sbr.rel (%p228) target = $region40
      $region39: #{tpu_custom_call.1} parent=5 // pred_region
        %s232 = ssub.s32 %s18, 1
        %s233 = sand.u32 %s31, 1
        %s234 = scalar_lea.sflag [#allocation3], %s233
        %s235 = sand.u32 %s31, 1
        %s236 = smul.addr %s235, 192
        %s237 = scalar_lea.vmem [#allocation2], %s236
        // Predicated region
        $region41: #{tpu_custom_call.1} parent=39 // pred_check
          %p238 = pneg %p44
        $region42: #{tpu_custom_call.1} parent=39 // pred_check_branch
          %240 = sbr.rel (%p238) target = $region44
        $region43: #{tpu_custom_call.1} parent=39 // pred_region
          %241 = dma.done %s234, 3072
        $region44: #{tpu_custom_call.1} parent=39 // pred_fallthru
          _
        // Predicated region
        $region45: #{tpu_custom_call.1} parent=39 // pred_check
          %p242 = pneg %p65
        $region46: #{tpu_custom_call.1} parent=39 // pred_check_branch
          %244 = sbr.rel (%p242) target = $region48
        $region47: #{tpu_custom_call.1} parent=39 // pred_region
          %245 = dma.done [#allocation6], 2048
        $region48: #{tpu_custom_call.1} parent=39 // pred_fallthru
          _
        // Predicated region
        $region49: #{tpu_custom_call.1} parent=39 // pred_check
          %p246 = pneg %p107
        $region50: #{tpu_custom_call.1} parent=39 // pred_check_branch
          %248 = sbr.rel (%p246) target = $region52
        $region51: #{tpu_custom_call.1} parent=39 // pred_region
          %249 = dma.done [#allocation6], 4096
        $region52: #{tpu_custom_call.1} parent=39 // pred_fallthru
          _
        %s250 = sand.u32 %s31, 1
        %s251 = scalar_lea.sflag [#allocation3], %s250
        %s252 = sand.u32 %s31, 1
        %s253 = smul.addr %s252, 192
        %s254 = scalar_lea.vmem [#allocation2], %s253
        %p255 = pneg %p44
        %p256 = pneg %p41
        %p257 = pneg %p65
        %p258 = pneg %p62
        %p259 = pneg %p86
        %p260 = pneg %p83
        %p261 = pneg %p107
        %p262 = pneg %p104
        %p263 = pneg %p128
        %p264 = pneg %p125
        %p265 = pneg %p154
        %p266 = pneg %p151
        %s267 = sand.u32 %s141, 1
        %s268 = scalar_lea.sflag [#allocation4], %s267
        %s269 = sand.u32 %s141, 1
        %s270 = smul.addr %s269, 384
        %s271 = scalar_lea.vmem [#allocation8], %s270
        %s272 = smul.u32 24, %s23
        %s273 = smul.u32 24, %s23
        %v275 = vld [vmem:[%s237] sm:$0xff]
        %v276 = vld [vmem:[%s237 + $0x8] sm:$0xff]
        %v277 = vld [vmem:[%s237 + $0x10] sm:$0xff]
        %v278 = vld [vmem:[%s237 + $0x18] sm:$0xff]
        %v279 = vld [vmem:[%s237 + $0x20] sm:$0xff]
        %v280 = vld [vmem:[%s237 + $0x28] sm:$0xff]
        %v281 = vld [vmem:[%s237 + $0x30] sm:$0xff]
        %v282 = vld [vmem:[%s237 + $0x38] sm:$0xff]
        %v283 = vld [vmem:[%s237 + $0x40] sm:$0xff]
        %v284 = vld [vmem:[%s237 + $0x48] sm:$0xff]
        %v285 = vld [vmem:[%s237 + $0x50] sm:$0xff]
        %v286 = vld [vmem:[%s237 + $0x58] sm:$0xff]
        %v287 = vld [vmem:[%s237 + $0x60] sm:$0xff]
        %v288 = vld [vmem:[%s237 + $0x68] sm:$0xff]
        %v289 = vld [vmem:[%s237 + $0x70] sm:$0xff]
        %v290 = vld [vmem:[%s237 + $0x78] sm:$0xff]
        %v291 = vld [vmem:[%s237 + $0x80] sm:$0xff]
        %v292 = vld [vmem:[%s237 + $0x88] sm:$0xff]
        %v293 = vld [vmem:[%s237 + $0x90] sm:$0xff]
        %v294 = vld [vmem:[%s237 + $0x98] sm:$0xff]
        %v295 = vld [vmem:[%s237 + $0xa0] sm:$0xff]
        %v296 = vld [vmem:[%s237 + $0xa8] sm:$0xff]
        %v297 = vld [vmem:[%s237 + $0xb0] sm:$0xff]
        %v298 = vld [vmem:[%s237 + $0xb8] sm:$0xff]
        %v299 = vpack.c.bf16 %v276, %v275
        %v300 = vpack.c.bf16 %v278, %v277
        %v301 = vpack.c.bf16 %v280, %v279
        %v302 = vpack.c.bf16 %v282, %v281
        %v303 = vpack.c.bf16 %v284, %v283
        %v304 = vpack.c.bf16 %v286, %v285
        %v305 = vpack.c.bf16 %v288, %v287
        %v306 = vpack.c.bf16 %v290, %v289
        %v307 = vpack.c.bf16 %v292, %v291
        %v308 = vpack.c.bf16 %v294, %v293
        %v309 = vpack.c.bf16 %v296, %v295
        %v310 = vpack.c.bf16 %v298, %v297
        %v311 = vld [vmem:[#allocation5] sm:$0xff]
        %v312 = vld [vmem:[#allocation5 + $0x8] sm:$0xff]
        %v313 = vld [vmem:[#allocation5 + $0x10] sm:$0xff]
        %v314 = vld [vmem:[#allocation5 + $0x18] sm:$0xff]
        %v315 = vld [vmem:[#allocation5 + $0x20] sm:$0xff]
        %v316 = vld [vmem:[#allocation5 + $0x28] sm:$0xff]
        %v317 = vld [vmem:[#allocation5 + $0x30] sm:$0xff]
        %v318 = vld [vmem:[#allocation5 + $0x38] sm:$0xff]
        %v319 = vld [vmem:[#allocation5 + $0x40] sm:$0xff]
        %v320 = vld [vmem:[#allocation5 + $0x48] sm:$0xff]
        %v321 = vld [vmem:[#allocation5 + $0x50] sm:$0xff]
        %v322 = vld [vmem:[#allocation5 + $0x58] sm:$0xff]
        %v323 = vld [vmem:[#allocation5 + $0x60] sm:$0xff]
        %v324 = vld [vmem:[#allocation5 + $0x68] sm:$0xff]
        %v325 = vld [vmem:[#allocation5 + $0x70] sm:$0xff]
        %v326 = vld [vmem:[#allocation5 + $0x78] sm:$0xff]
        %v327 = vld [vmem:[%s2] sm:$0x3]
        %v329 = vlaneseq
        %v330 = vshrl.u32 %v329, 7
        %v331 = vsub.s32 0, %v330
        %v332 = vrot.slane %v327, %v331
        %v333 = vlaneseq
        %v334 = vshrl.u32 %v333, 7
        %v335 = vsub.s32 1, %v334
        %v336 = vrot.slane %v327, %v335
        %v355 = vunpack.c.l.b16 %v311
        %v356 = vunpack.c.h.b16 %v311
        %v357 = vunpack.c.l.b16 %v312
        %v358 = vunpack.c.h.b16 %v312
        %v359 = vunpack.c.l.b16 %v313
        %v360 = vunpack.c.h.b16 %v313
        %v361 = vunpack.c.l.b16 %v314
        %v362 = vunpack.c.h.b16 %v314
        %v363 = vunpack.c.l.b16 %v315
        %v364 = vunpack.c.h.b16 %v315
        %v365 = vunpack.c.l.b16 %v316
        %v366 = vunpack.c.h.b16 %v316
        %v367 = vunpack.c.l.b16 %v317
        %v368 = vunpack.c.h.b16 %v317
        %v369 = vunpack.c.l.b16 %v318
        %v370 = vunpack.c.h.b16 %v318
        %v371 = vunpack.c.l.b16 %v319
        %v372 = vunpack.c.h.b16 %v319
        %v373 = vunpack.c.l.b16 %v320
        %v374 = vunpack.c.h.b16 %v320
        %v375 = vunpack.c.l.b16 %v321
        %v376 = vunpack.c.h.b16 %v321
        %v377 = vunpack.c.l.b16 %v322
        %v378 = vunpack.c.h.b16 %v322
        %v379 = vunpack.c.l.b16 %v323
        %v380 = vunpack.c.h.b16 %v323
        %v381 = vunpack.c.l.b16 %v324
        %v382 = vunpack.c.h.b16 %v324
        %v383 = vunpack.c.l.b16 %v325
        %v384 = vunpack.c.h.b16 %v325
        %v385 = vunpack.c.l.b16 %v326
        %v386 = vunpack.c.h.b16 %v326
        %v387 = vpack.c.b16 %v357, %v355
        %v388 = vpack.c.b16 %v358, %v356
        %v389 = vpack.c.b16 %v361, %v359
        %v390 = vpack.c.b16 %v362, %v360
        %v391 = vpack.c.b16 %v365, %v363
        %v392 = vpack.c.b16 %v366, %v364
        %v393 = vpack.c.b16 %v369, %v367
        %v394 = vpack.c.b16 %v370, %v368
        %v395 = vpack.c.b16 %v373, %v371
        %v396 = vpack.c.b16 %v374, %v372
        %v397 = vpack.c.b16 %v377, %v375
        %v398 = vpack.c.b16 %v378, %v376
        %v399 = vpack.c.b16 %v381, %v379
        %v400 = vpack.c.b16 %v382, %v380
        %v401 = vpack.c.b16 %v385, %v383
        %v402 = vpack.c.b16 %v386, %v384
        %419 = vmatprep.subr.bf16.mxu0 %v388
        %420 = vmatpush1.bf16.msra.mxu0 %v387
        %421 = vmatprep.subr.bf16.mxu0 %v390
        %422 = vmatpush1.bf16.msra.mxu0 %v389
        %423 = vmatprep.subr.bf16.mxu0 %v392
        %424 = vmatpush1.bf16.msra.mxu0 %v391
        %425 = vmatprep.subr.bf16.mxu0 %v394
        %426 = vmatpush1.bf16.msra.mxu0 %v393
        %427 = vmatprep.subr.bf16.mxu0 %v396
        %428 = vmatpush1.bf16.msra.mxu0 %v395
        %429 = vmatprep.subr.bf16.mxu0 %v398
        %430 = vmatpush1.bf16.msra.mxu0 %v397
        %431 = vmatprep.subr.bf16.mxu0 %v400
        %432 = vmatpush1.bf16.msra.mxu0 %v399
        %433 = vmatprep.subr.bf16.mxu0 %v402
        %434 = vmatpush1.bf16.msra.mxu0 %v401
        %435 = vmatprep.subr.bf16.mxu0 0
        %436 = vmatpush1.bf16.msra.mxu0 0
        %437 = vmatprep.subr.bf16.mxu0 0
        %438 = vmatpush1.bf16.msra.mxu0 0
        %439 = vmatprep.subr.bf16.mxu0 0
        %440 = vmatpush1.bf16.msra.mxu0 0
        %441 = vmatprep.subr.bf16.mxu0 0
        %442 = vmatpush1.bf16.msra.mxu0 0
        %443 = vmatprep.subr.bf16.mxu0 0
        %444 = vmatpush1.bf16.msra.mxu0 0
        %445 = vmatprep.subr.bf16.mxu0 0
        %446 = vmatpush1.bf16.msra.mxu0 0
        %447 = vmatprep.subr.bf16.mxu0 0
        %448 = vmatpush1.bf16.msra.mxu0 0
        %449 = vmatprep.subr.bf16.mxu0 0
        %450 = vmatpush1.bf16.msra.mxu0 0
        %451 = vmatprep.mubr.bf16.mxu0 0
        %452 = vmatmul.mubr.bf16.gmra.mrb[0].mxu0 %v299
        %v453 = vpop.f32.mrb[0].mxu0
        %v454 = vadd.f32 %v332, %v453
        %v455 = vpop.f32.mrb[0].mxu0
        %v456 = vadd.f32 %v336, %v455
        %v457 = vpop.f32.mrb[0].mxu0
        %v458 = vadd.f32 %v332, %v457
        %v459 = vpop.f32.mrb[0].mxu0
        %v460 = vadd.f32 %v336, %v459
        %461 = vmatprep.mubr.bf16.mxu0 0
        %462 = vmatmul.mubr.bf16.gmra.mrb[0].mxu0 %v300
        %v463 = vpop.f32.mrb[0].mxu0
        %v464 = vadd.f32 %v332, %v463
        %v465 = vpop.f32.mrb[0].mxu0
        %v466 = vadd.f32 %v336, %v465
        %v467 = vpop.f32.mrb[0].mxu0
        %v468 = vadd.f32 %v332, %v467
        %v469 = vpop.f32.mrb[0].mxu0
        %v470 = vadd.f32 %v336, %v469
        %471 = vmatprep.mubr.bf16.mxu0 0
        %472 = vmatmul.mubr.bf16.gmra.mrb[0].mxu0 %v301
        %v473 = vpop.f32.mrb[0].mxu0
        %v474 = vadd.f32 %v332, %v473
        %v475 = vpop.f32.mrb[0].mxu0
        %v476 = vadd.f32 %v336, %v475
        %v477 = vpop.f32.mrb[0].mxu0
        %v478 = vadd.f32 %v332, %v477
        %v479 = vpop.f32.mrb[0].mxu0
        %v480 = vadd.f32 %v336, %v479
        %481 = vmatprep.mubr.bf16.mxu0 0
        %482 = vmatmul.mubr.bf16.gmra.mrb[0].mxu0 %v302
        %v483 = vpop.f32.mrb[0].mxu0
        %v484 = vadd.f32 %v332, %v483
        %v485 = vpop.f32.mrb[0].mxu0
        %v486 = vadd.f32 %v336, %v485
        %v487 = vpop.f32.mrb[0].mxu0
        %v488 = vadd.f32 %v332, %v487
        %v489 = vpop.f32.mrb[0].mxu0
        %v490 = vadd.f32 %v336, %v489
        %491 = vmatprep.mubr.bf16.mxu0 0
        %492 = vmatmul.mubr.bf16.gmra.mrb[0].mxu0 %v303
        %v493 = vpop.f32.mrb[0].mxu0
        %v494 = vadd.f32 %v332, %v493
        %v495 = vpop.f32.mrb[0].mxu0
        %v496 = vadd.f32 %v336, %v495
        %v497 = vpop.f32.mrb[0].mxu0
        %v498 = vadd.f32 %v332, %v497
        %v499 = vpop.f32.mrb[0].mxu0
        %v500 = vadd.f32 %v336, %v499
        %501 = vmatprep.mubr.bf16.mxu0 0
        %502 = vmatmul.mubr.bf16.gmra.mrb[0].mxu0 %v304
        %v503 = vpop.f32.mrb[0].mxu0
        %v504 = vadd.f32 %v332, %v503
        %v505 = vpop.f32.mrb[0].mxu0
        %v506 = vadd.f32 %v336, %v505
        %v507 = vpop.f32.mrb[0].mxu0
        %v508 = vadd.f32 %v332, %v507
        %v509 = vpop.f32.mrb[0].mxu0
        %v510 = vadd.f32 %v336, %v509
        %511 = vmatprep.mubr.bf16.mxu0 0
        %512 = vmatmul.mubr.bf16.gmra.mrb[0].mxu0 %v305
        %v513 = vpop.f32.mrb[0].mxu0
        %v514 = vadd.f32 %v332, %v513
        %v515 = vpop.f32.mrb[0].mxu0
        %v516 = vadd.f32 %v336, %v515
        %v517 = vpop.f32.mrb[0].mxu0
        %v518 = vadd.f32 %v332, %v517
        %v519 = vpop.f32.mrb[0].mxu0
        %v520 = vadd.f32 %v336, %v519
        %521 = vmatprep.mubr.bf16.mxu0 0
        %522 = vmatmul.mubr.bf16.gmra.mrb[0].mxu0 %v306
        %v523 = vpop.f32.mrb[0].mxu0
        %v524 = vadd.f32 %v332, %v523
        %v525 = vpop.f32.mrb[0].mxu0
        %v526 = vadd.f32 %v336, %v525
        %v527 = vpop.f32.mrb[0].mxu0
        %v528 = vadd.f32 %v332, %v527
        %v529 = vpop.f32.mrb[0].mxu0
        %v530 = vadd.f32 %v336, %v529
        %531 = vmatprep.mubr.bf16.mxu0 0
        %532 = vmatmul.mubr.bf16.gmra.mrb[0].mxu0 %v307
        %v533 = vpop.f32.mrb[0].mxu0
        %v534 = vadd.f32 %v332, %v533
        %v535 = vpop.f32.mrb[0].mxu0
        %v536 = vadd.f32 %v336, %v535
        %v537 = vpop.f32.mrb[0].mxu0
        %v538 = vadd.f32 %v332, %v537
        %v539 = vpop.f32.mrb[0].mxu0
        %v540 = vadd.f32 %v336, %v539
        %541 = vmatprep.mubr.bf16.mxu0 0
        %542 = vmatmul.mubr.bf16.gmra.mrb[0].mxu0 %v308
        %v543 = vpop.f32.mrb[0].mxu0
        %v544 = vadd.f32 %v332, %v543
        %v545 = vpop.f32.mrb[0].mxu0
        %v546 = vadd.f32 %v336, %v545
        %v547 = vpop.f32.mrb[0].mxu0
        %v548 = vadd.f32 %v332, %v547
        %v549 = vpop.f32.mrb[0].mxu0
        %v550 = vadd.f32 %v336, %v549
        %551 = vmatprep.mubr.bf16.mxu0 0
        %552 = vmatmul.mubr.bf16.gmra.mrb[0].mxu0 %v309
        %v553 = vpop.f32.mrb[0].mxu0
        %v554 = vadd.f32 %v332, %v553
        %v555 = vpop.f32.mrb[0].mxu0
        %v556 = vadd.f32 %v336, %v555
        %v557 = vpop.f32.mrb[0].mxu0
        %v558 = vadd.f32 %v332, %v557
        %v559 = vpop.f32.mrb[0].mxu0
        %v560 = vadd.f32 %v336, %v559
        %561 = vmatprep.mubr.bf16.mxu0 0
        %562 = vmatmul.mubr.bf16.gmra.mrb[0].mxu0 %v310
        %v563 = vpop.f32.mrb[0].mxu0
        %v564 = vadd.f32 %v332, %v563
        %v565 = vpop.f32.mrb[0].mxu0
        %v566 = vadd.f32 %v336, %v565
        %v567 = vpop.f32.mrb[0].mxu0
        %v568 = vadd.f32 %v332, %v567
        %v569 = vpop.f32.mrb[0].mxu0
        %v570 = vadd.f32 %v336, %v569
        %571 = vdwg.mxu0
        %v572 = vmax.f32 %v454, 0.0
        %v573 = vmax.f32 %v456, 0.0
        %v574 = vmax.f32 %v458, 0.0
        %v575 = vmax.f32 %v460, 0.0
        %v576 = vmax.f32 %v464, 0.0
        %v577 = vmax.f32 %v466, 0.0
        %v578 = vmax.f32 %v468, 0.0
        %v579 = vmax.f32 %v470, 0.0
        %v580 = vmax.f32 %v474, 0.0
        %v581 = vmax.f32 %v476, 0.0
        %v582 = vmax.f32 %v478, 0.0
        %v583 = vmax.f32 %v480, 0.0
        %v584 = vmax.f32 %v484, 0.0
        %v585 = vmax.f32 %v486, 0.0
        %v586 = vmax.f32 %v488, 0.0
        %v587 = vmax.f32 %v490, 0.0
        %v588 = vmax.f32 %v494, 0.0
        %v589 = vmax.f32 %v496, 0.0
        %v590 = vmax.f32 %v498, 0.0
        %v591 = vmax.f32 %v500, 0.0
        %v592 = vmax.f32 %v504, 0.0
        %v593 = vmax.f32 %v506, 0.0
        %v594 = vmax.f32 %v508, 0.0
        %v595 = vmax.f32 %v510, 0.0
        %v596 = vmax.f32 %v514, 0.0
        %v597 = vmax.f32 %v516, 0.0
        %v598 = vmax.f32 %v518, 0.0
        %v599 = vmax.f32 %v520, 0.0
        %v600 = vmax.f32 %v524, 0.0
        %v601 = vmax.f32 %v526, 0.0
        %v602 = vmax.f32 %v528, 0.0
        %v603 = vmax.f32 %v530, 0.0
        %v604 = vmax.f32 %v534, 0.0
        %v605 = vmax.f32 %v536, 0.0
        %v606 = vmax.f32 %v538, 0.0
        %v607 = vmax.f32 %v540, 0.0
        %v608 = vmax.f32 %v544, 0.0
        %v609 = vmax.f32 %v546, 0.0
        %v610 = vmax.f32 %v548, 0.0
        %v611 = vmax.f32 %v550, 0.0
        %v612 = vmax.f32 %v554, 0.0
        %v613 = vmax.f32 %v556, 0.0
        %v614 = vmax.f32 %v558, 0.0
        %v615 = vmax.f32 %v560, 0.0
        %v616 = vmax.f32 %v564, 0.0
        %v617 = vmax.f32 %v566, 0.0
        %v618 = vmax.f32 %v568, 0.0
        %v619 = vmax.f32 %v570, 0.0
        %v620 = vpack.c.bf16 %v574, %v572
        %v621 = vpack.c.bf16 %v575, %v573
        %v622 = vpack.c.bf16 %v578, %v576
        %v623 = vpack.c.bf16 %v579, %v577
        %v624 = vpack.c.bf16 %v582, %v580
        %v625 = vpack.c.bf16 %v583, %v581
        %v626 = vpack.c.bf16 %v586, %v584
        %v627 = vpack.c.bf16 %v587, %v585
        %v628 = vpack.c.bf16 %v590, %v588
        %v629 = vpack.c.bf16 %v591, %v589
        %v630 = vpack.c.bf16 %v594, %v592
        %v631 = vpack.c.bf16 %v595, %v593
        %v632 = vpack.c.bf16 %v598, %v596
        %v633 = vpack.c.bf16 %v599, %v597
        %v634 = vpack.c.bf16 %v602, %v600
        %v635 = vpack.c.bf16 %v603, %v601
        %v636 = vpack.c.bf16 %v606, %v604
        %v637 = vpack.c.bf16 %v607, %v605
        %v638 = vpack.c.bf16 %v610, %v608
        %v639 = vpack.c.bf16 %v611, %v609
        %v640 = vpack.c.bf16 %v614, %v612
        %v641 = vpack.c.bf16 %v615, %v613
        %v642 = vpack.c.bf16 %v618, %v616
        %v643 = vpack.c.bf16 %v619, %v617
        %v644 = vld [vmem:[#allocation7] sm:$0xff]
        %v645 = vld [vmem:[#allocation7 + $0x8] sm:$0xff]
        %v646 = vld [vmem:[#allocation7 + $0x10] sm:$0xff]
        %v647 = vld [vmem:[#allocation7 + $0x18] sm:$0xff]
        %v648 = vld [vmem:[#allocation7 + $0x20] sm:$0xff]
        %v649 = vld [vmem:[#allocation7 + $0x28] sm:$0xff]
        %v650 = vld [vmem:[#allocation7 + $0x30] sm:$0xff]
        %v651 = vld [vmem:[#allocation7 + $0x38] sm:$0xff]
        %v652 = vld [vmem:[#allocation7 + $0x40] sm:$0xff]
        %v653 = vld [vmem:[#allocation7 + $0x48] sm:$0xff]
        %v654 = vld [vmem:[#allocation7 + $0x50] sm:$0xff]
        %v655 = vld [vmem:[#allocation7 + $0x58] sm:$0xff]
        %v656 = vld [vmem:[#allocation7 + $0x60] sm:$0xff]
        %v657 = vld [vmem:[#allocation7 + $0x68] sm:$0xff]
        %v658 = vld [vmem:[#allocation7 + $0x70] sm:$0xff]
        %v659 = vld [vmem:[#allocation7 + $0x78] sm:$0xff]
        %v660 = vld [vmem:[#allocation7 + $0x80] sm:$0xff]
        %v661 = vld [vmem:[#allocation7 + $0x88] sm:$0xff]
        %v662 = vld [vmem:[#allocation7 + $0x90] sm:$0xff]
        %v663 = vld [vmem:[#allocation7 + $0x98] sm:$0xff]
        %v664 = vld [vmem:[#allocation7 + $0xa0] sm:$0xff]
        %v665 = vld [vmem:[#allocation7 + $0xa8] sm:$0xff]
        %v666 = vld [vmem:[#allocation7 + $0xb0] sm:$0xff]
        %v667 = vld [vmem:[#allocation7 + $0xb8] sm:$0xff]
        %v668 = vld [vmem:[#allocation7 + $0xc0] sm:$0xff]
        %v669 = vld [vmem:[#allocation7 + $0xc8] sm:$0xff]
        %v670 = vld [vmem:[#allocation7 + $0xd0] sm:$0xff]
        %v671 = vld [vmem:[#allocation7 + $0xd8] sm:$0xff]
        %v672 = vld [vmem:[#allocation7 + $0xe0] sm:$0xff]
        %v673 = vld [vmem:[#allocation7 + $0xe8] sm:$0xff]
        %v674 = vld [vmem:[#allocation7 + $0xf0] sm:$0xff]
        %v675 = vld [vmem:[#allocation7 + $0xf8] sm:$0xff]
        %v676 = vld [vmem:[%s4] sm:$0x3]
        %v678 = vlaneseq
        %v679 = vshrl.u32 %v678, 7
        %v680 = vsub.s32 0, %v679
        %v681 = vrot.slane %v676, %v680
        %v682 = vlaneseq
        %v683 = vshrl.u32 %v682, 7
        %v684 = vsub.s32 1, %v683
        %v685 = vrot.slane %v676, %v684
        %v720 = vunpack.c.l.b16 %v644
        %v721 = vunpack.c.h.b16 %v644
        %v722 = vunpack.c.l.b16 %v645
        %v723 = vunpack.c.h.b16 %v645
        %v724 = vunpack.c.l.b16 %v646
        %v725 = vunpack.c.h.b16 %v646
        %v726 = vunpack.c.l.b16 %v647
        %v727 = vunpack.c.h.b16 %v647
        %v728 = vunpack.c.l.b16 %v648
        %v729 = vunpack.c.h.b16 %v648
        %v730 = vunpack.c.l.b16 %v649
        %v731 = vunpack.c.h.b16 %v649
        %v732 = vunpack.c.l.b16 %v650
        %v733 = vunpack.c.h.b16 %v650
        %v734 = vunpack.c.l.b16 %v651
        %v735 = vunpack.c.h.b16 %v651
        %v736 = vunpack.c.l.b16 %v652
        %v737 = vunpack.c.h.b16 %v652
        %v738 = vunpack.c.l.b16 %v653
        %v739 = vunpack.c.h.b16 %v653
        %v740 = vunpack.c.l.b16 %v654
        %v741 = vunpack.c.h.b16 %v654
        %v742 = vunpack.c.l.b16 %v655
        %v743 = vunpack.c.h.b16 %v655
        %v744 = vunpack.c.l.b16 %v656
        %v745 = vunpack.c.h.b16 %v656
        %v746 = vunpack.c.l.b16 %v657
        %v747 = vunpack.c.h.b16 %v657
        %v748 = vunpack.c.l.b16 %v658
        %v749 = vunpack.c.h.b16 %v658
        %v750 = vunpack.c.l.b16 %v659
        %v751 = vunpack.c.h.b16 %v659
        %v752 = vunpack.c.l.b16 %v660
        %v753 = vunpack.c.h.b16 %v660
        %v754 = vunpack.c.l.b16 %v661
        %v755 = vunpack.c.h.b16 %v661
        %v756 = vunpack.c.l.b16 %v662
        %v757 = vunpack.c.h.b16 %v662
        %v758 = vunpack.c.l.b16 %v663
        %v759 = vunpack.c.h.b16 %v663
        %v760 = vunpack.c.l.b16 %v664
        %v761 = vunpack.c.h.b16 %v664
        %v762 = vunpack.c.l.b16 %v665
        %v763 = vunpack.c.h.b16 %v665
        %v764 = vunpack.c.l.b16 %v666
        %v765 = vunpack.c.h.b16 %v666
        %v766 = vunpack.c.l.b16 %v667
        %v767 = vunpack.c.h.b16 %v667
        %v768 = vunpack.c.l.b16 %v668
        %v769 = vunpack.c.h.b16 %v668
        %v770 = vunpack.c.l.b16 %v669
        %v771 = vunpack.c.h.b16 %v669
        %v772 = vunpack.c.l.b16 %v670
        %v773 = vunpack.c.h.b16 %v670
        %v774 = vunpack.c.l.b16 %v671
        %v775 = vunpack.c.h.b16 %v671
        %v776 = vunpack.c.l.b16 %v672
        %v777 = vunpack.c.h.b16 %v672
        %v778 = vunpack.c.l.b16 %v673
        %v779 = vunpack.c.h.b16 %v673
        %v780 = vunpack.c.l.b16 %v674
        %v781 = vunpack.c.h.b16 %v674
        %v782 = vunpack.c.l.b16 %v675
        %v783 = vunpack.c.h.b16 %v675
        %v784 = vpack.c.b16 %v722, %v720
        %v785 = vpack.c.b16 %v723, %v721
        %v786 = vpack.c.b16 %v726, %v724
        %v787 = vpack.c.b16 %v727, %v725
        %v788 = vpack.c.b16 %v730, %v728
        %v789 = vpack.c.b16 %v731, %v729
        %v790 = vpack.c.b16 %v734, %v732
        %v791 = vpack.c.b16 %v735, %v733
        %v792 = vpack.c.b16 %v738, %v736
        %v793 = vpack.c.b16 %v739, %v737
        %v794 = vpack.c.b16 %v742, %v740
        %v795 = vpack.c.b16 %v743, %v741
        %v796 = vpack.c.b16 %v746, %v744
        %v797 = vpack.c.b16 %v747, %v745
        %v798 = vpack.c.b16 %v750, %v748
        %v799 = vpack.c.b16 %v751, %v749
        %v800 = vpack.c.b16 %v754, %v752
        %v801 = vpack.c.b16 %v755, %v753
        %v802 = vpack.c.b16 %v758, %v756
        %v803 = vpack.c.b16 %v759, %v757
        %v804 = vpack.c.b16 %v762, %v760
        %v805 = vpack.c.b16 %v763, %v761
        %v806 = vpack.c.b16 %v766, %v764
        %v807 = vpack.c.b16 %v767, %v765
        %v808 = vpack.c.b16 %v770, %v768
        %v809 = vpack.c.b16 %v771, %v769
        %v810 = vpack.c.b16 %v774, %v772
        %v811 = vpack.c.b16 %v775, %v773
        %v812 = vpack.c.b16 %v778, %v776
        %v813 = vpack.c.b16 %v779, %v777
        %v814 = vpack.c.b16 %v782, %v780
        %v815 = vpack.c.b16 %v783, %v781
        %848 = vmatprep.subr.bf16.mxu0 %v785
        %849 = vmatpush1.bf16.msra.mxu0 %v784
        %850 = vmatprep.subr.bf16.mxu0 %v787
        %851 = vmatpush1.bf16.msra.mxu0 %v786
        %852 = vmatprep.subr.bf16.mxu0 %v789
        %853 = vmatpush1.bf16.msra.mxu0 %v788
        %854 = vmatprep.subr.bf16.mxu0 %v791
        %855 = vmatpush1.bf16.msra.mxu0 %v790
        %856 = vmatprep.subr.bf16.mxu0 %v793
        %857 = vmatpush1.bf16.msra.mxu0 %v792
        %858 = vmatprep.subr.bf16.mxu0 %v795
        %859 = vmatpush1.bf16.msra.mxu0 %v794
        %860 = vmatprep.subr.bf16.mxu0 %v797
        %861 = vmatpush1.bf16.msra.mxu0 %v796
        %862 = vmatprep.subr.bf16.mxu0 %v799
        %863 = vmatpush1.bf16.msra.mxu0 %v798
        %864 = vmatprep.subr.bf16.mxu0 %v801
        %865 = vmatpush1.bf16.msra.mxu0 %v800
        %866 = vmatprep.subr.bf16.mxu0 %v803
        %867 = vmatpush1.bf16.msra.mxu0 %v802
        %868 = vmatprep.subr.bf16.mxu0 %v805
        %869 = vmatpush1.bf16.msra.mxu0 %v804
        %870 = vmatprep.subr.bf16.mxu0 %v807
        %871 = vmatpush1.bf16.msra.mxu0 %v806
        %872 = vmatprep.subr.bf16.mxu0 %v809
        %873 = vmatpush1.bf16.msra.mxu0 %v808
        %874 = vmatprep.subr.bf16.mxu0 %v811
        %875 = vmatpush1.bf16.msra.mxu0 %v810
        %876 = vmatprep.subr.bf16.mxu0 %v813
        %877 = vmatpush1.bf16.msra.mxu0 %v812
        %878 = vmatprep.subr.bf16.mxu0 %v815
        %879 = vmatpush1.bf16.msra.mxu0 %v814
        %880 = vmatprep.mubr.bf16.mxu0 %v621
        %881 = vmatmul.mubr.bf16.gmra.mrb[0].mxu0 %v620
        %v882 = vpop.f32.mrb[0].mxu0
        %v883 = vadd.f32 %v681, %v882
        %v884 = vpop.f32.mrb[0].mxu0
        %v885 = vadd.f32 %v685, %v884
        %v886 = vpop.f32.mrb[0].mxu0
        %v887 = vadd.f32 %v681, %v886
        %v888 = vpop.f32.mrb[0].mxu0
        %v889 = vadd.f32 %v685, %v888
        %890 = vmatprep.mubr.bf16.mxu0 %v623
        %891 = vmatmul.mubr.bf16.gmra.mrb[0].mxu0 %v622
        %v892 = vpop.f32.mrb[0].mxu0
        %v893 = vadd.f32 %v681, %v892
        %v894 = vpop.f32.mrb[0].mxu0
        %v895 = vadd.f32 %v685, %v894
        %v896 = vpop.f32.mrb[0].mxu0
        %v897 = vadd.f32 %v681, %v896
        %v898 = vpop.f32.mrb[0].mxu0
        %v899 = vadd.f32 %v685, %v898
        %900 = vmatprep.mubr.bf16.mxu0 %v625
        %901 = vmatmul.mubr.bf16.gmra.mrb[0].mxu0 %v624
        %v902 = vpop.f32.mrb[0].mxu0
        %v903 = vadd.f32 %v681, %v902
        %v904 = vpop.f32.mrb[0].mxu0
        %v905 = vadd.f32 %v685, %v904
        %v906 = vpop.f32.mrb[0].mxu0
        %v907 = vadd.f32 %v681, %v906
        %v908 = vpop.f32.mrb[0].mxu0
        %v909 = vadd.f32 %v685, %v908
        %910 = vmatprep.mubr.bf16.mxu0 %v627
        %911 = vmatmul.mubr.bf16.gmra.mrb[0].mxu0 %v626
        %v912 = vpop.f32.mrb[0].mxu0
        %v913 = vadd.f32 %v681, %v912
        %v914 = vpop.f32.mrb[0].mxu0
        %v915 = vadd.f32 %v685, %v914
        %v916 = vpop.f32.mrb[0].mxu0
        %v917 = vadd.f32 %v681, %v916
        %v918 = vpop.f32.mrb[0].mxu0
        %v919 = vadd.f32 %v685, %v918
        %920 = vmatprep.mubr.bf16.mxu0 %v629
        %921 = vmatmul.mubr.bf16.gmra.mrb[0].mxu0 %v628
        %v922 = vpop.f32.mrb[0].mxu0
        %v923 = vadd.f32 %v681, %v922
        %v924 = vpop.f32.mrb[0].mxu0
        %v925 = vadd.f32 %v685, %v924
        %v926 = vpop.f32.mrb[0].mxu0
        %v927 = vadd.f32 %v681, %v926
        %v928 = vpop.f32.mrb[0].mxu0
        %v929 = vadd.f32 %v685, %v928
        %930 = vmatprep.mubr.bf16.mxu0 %v631
        %931 = vmatmul.mubr.bf16.gmra.mrb[0].mxu0 %v630
        %v932 = vpop.f32.mrb[0].mxu0
        %v933 = vadd.f32 %v681, %v932
        %v934 = vpop.f32.mrb[0].mxu0
        %v935 = vadd.f32 %v685, %v934
        %v936 = vpop.f32.mrb[0].mxu0
        %v937 = vadd.f32 %v681, %v936
        %v938 = vpop.f32.mrb[0].mxu0
        %v939 = vadd.f32 %v685, %v938
        %940 = vmatprep.mubr.bf16.mxu0 %v633
        %941 = vmatmul.mubr.bf16.gmra.mrb[0].mxu0 %v632
        %v942 = vpop.f32.mrb[0].mxu0
        %v943 = vadd.f32 %v681, %v942
        %v944 = vpop.f32.mrb[0].mxu0
        %v945 = vadd.f32 %v685, %v944
        %v946 = vpop.f32.mrb[0].mxu0
        %v947 = vadd.f32 %v681, %v946
        %v948 = vpop.f32.mrb[0].mxu0
        %v949 = vadd.f32 %v685, %v948
        %950 = vmatprep.mubr.bf16.mxu0 %v635
        %951 = vmatmul.mubr.bf16.gmra.mrb[0].mxu0 %v634
        %v952 = vpop.f32.mrb[0].mxu0
        %v953 = vadd.f32 %v681, %v952
        %v954 = vpop.f32.mrb[0].mxu0
        %v955 = vadd.f32 %v685, %v954
        %v956 = vpop.f32.mrb[0].mxu0
        %v957 = vadd.f32 %v681, %v956
        %v958 = vpop.f32.mrb[0].mxu0
        %v959 = vadd.f32 %v685, %v958
        %960 = vmatprep.mubr.bf16.mxu0 %v637
        %961 = vmatmul.mubr.bf16.gmra.mrb[0].mxu0 %v636
        %v962 = vpop.f32.mrb[0].mxu0
        %v963 = vadd.f32 %v681, %v962
        %v964 = vpop.f32.mrb[0].mxu0
        %v965 = vadd.f32 %v685, %v964
        %v966 = vpop.f32.mrb[0].mxu0
        %v967 = vadd.f32 %v681, %v966
        %v968 = vpop.f32.mrb[0].mxu0
        %v969 = vadd.f32 %v685, %v968
        %970 = vmatprep.mubr.bf16.mxu0 %v639
        %971 = vmatmul.mubr.bf16.gmra.mrb[0].mxu0 %v638
        %v972 = vpop.f32.mrb[0].mxu0
        %v973 = vadd.f32 %v681, %v972
        %v974 = vpop.f32.mrb[0].mxu0
        %v975 = vadd.f32 %v685, %v974
        %v976 = vpop.f32.mrb[0].mxu0
        %v977 = vadd.f32 %v681, %v976
        %v978 = vpop.f32.mrb[0].mxu0
        %v979 = vadd.f32 %v685, %v978
        %980 = vmatprep.mubr.bf16.mxu0 %v641
        %981 = vmatmul.mubr.bf16.gmra.mrb[0].mxu0 %v640
        %v982 = vpop.f32.mrb[0].mxu0
        %v983 = vadd.f32 %v681, %v982
        %v984 = vpop.f32.mrb[0].mxu0
        %v985 = vadd.f32 %v685, %v984
        %v986 = vpop.f32.mrb[0].mxu0
        %v987 = vadd.f32 %v681, %v986
        %v988 = vpop.f32.mrb[0].mxu0
        %v989 = vadd.f32 %v685, %v988
        %990 = vmatprep.mubr.bf16.mxu0 %v643
        %991 = vmatmul.mubr.bf16.gmra.mrb[0].mxu0 %v642
        %v992 = vpop.f32.mrb[0].mxu0
        %v993 = vadd.f32 %v681, %v992
        %v994 = vpop.f32.mrb[0].mxu0
        %v995 = vadd.f32 %v685, %v994
        %v996 = vpop.f32.mrb[0].mxu0
        %v997 = vadd.f32 %v681, %v996
        %v998 = vpop.f32.mrb[0].mxu0
        %v999 = vadd.f32 %v685, %v998
        %1000 = vdwg.mxu0
        %1001 = vst [vmem:[%s271] sm:$0xff] %v883
        %1002 = vst [vmem:[%s271 + $0x8] sm:$0xff] %v885
        %1003 = vst [vmem:[%s271 + $0x10] sm:$0xff] %v887
        %1004 = vst [vmem:[%s271 + $0x18] sm:$0xff] %v889
        %1005 = vst [vmem:[%s271 + $0x20] sm:$0xff] %v893
        %1006 = vst [vmem:[%s271 + $0x28] sm:$0xff] %v895
        %1007 = vst [vmem:[%s271 + $0x30] sm:$0xff] %v897
        %1008 = vst [vmem:[%s271 + $0x38] sm:$0xff] %v899
        %1009 = vst [vmem:[%s271 + $0x40] sm:$0xff] %v903
        %1010 = vst [vmem:[%s271 + $0x48] sm:$0xff] %v905
        %1011 = vst [vmem:[%s271 + $0x50] sm:$0xff] %v907
        %1012 = vst [vmem:[%s271 + $0x58] sm:$0xff] %v909
        %1013 = vst [vmem:[%s271 + $0x60] sm:$0xff] %v913
        %1014 = vst [vmem:[%s271 + $0x68] sm:$0xff] %v915
        %1015 = vst [vmem:[%s271 + $0x70] sm:$0xff] %v917
        %1016 = vst [vmem:[%s271 + $0x78] sm:$0xff] %v919
        %1017 = vst [vmem:[%s271 + $0x80] sm:$0xff] %v923
        %1018 = vst [vmem:[%s271 + $0x88] sm:$0xff] %v925
        %1019 = vst [vmem:[%s271 + $0x90] sm:$0xff] %v927
        %1020 = vst [vmem:[%s271 + $0x98] sm:$0xff] %v929
        %1021 = vst [vmem:[%s271 + $0xa0] sm:$0xff] %v933
        %1022 = vst [vmem:[%s271 + $0xa8] sm:$0xff] %v935
        %1023 = vst [vmem:[%s271 + $0xb0] sm:$0xff] %v937
        %1024 = vst [vmem:[%s271 + $0xb8] sm:$0xff] %v939
        %1025 = vst [vmem:[%s271 + $0xc0] sm:$0xff] %v943
        %1026 = vst [vmem:[%s271 + $0xc8] sm:$0xff] %v945
        %1027 = vst [vmem:[%s271 + $0xd0] sm:$0xff] %v947
        %1028 = vst [vmem:[%s271 + $0xd8] sm:$0xff] %v949
        %1029 = vst [vmem:[%s271 + $0xe0] sm:$0xff] %v953
        %1030 = vst [vmem:[%s271 + $0xe8] sm:$0xff] %v955
        %1031 = vst [vmem:[%s271 + $0xf0] sm:$0xff] %v957
        %1032 = vst [vmem:[%s271 + $0xf8] sm:$0xff] %v959
        %1033 = vst [vmem:[%s271 + $0x100] sm:$0xff] %v963
        %1034 = vst [vmem:[%s271 + $0x108] sm:$0xff] %v965
        %1035 = vst [vmem:[%s271 + $0x110] sm:$0xff] %v967
        %1036 = vst [vmem:[%s271 + $0x118] sm:$0xff] %v969
        %1037 = vst [vmem:[%s271 + $0x120] sm:$0xff] %v973
        %1038 = vst [vmem:[%s271 + $0x128] sm:$0xff] %v975
        %1039 = vst [vmem:[%s271 + $0x130] sm:$0xff] %v977
        %1040 = vst [vmem:[%s271 + $0x138] sm:$0xff] %v979
        %1041 = vst [vmem:[%s271 + $0x140] sm:$0xff] %v983
        %1042 = vst [vmem:[%s271 + $0x148] sm:$0xff] %v985
        %1043 = vst [vmem:[%s271 + $0x150] sm:$0xff] %v987
        %1044 = vst [vmem:[%s271 + $0x158] sm:$0xff] %v989
        %1045 = vst [vmem:[%s271 + $0x160] sm:$0xff] %v993
        %1046 = vst [vmem:[%s271 + $0x168] sm:$0xff] %v995
        %1047 = vst [vmem:[%s271 + $0x170] sm:$0xff] %v997
        %1048 = vst [vmem:[%s271 + $0x178] sm:$0xff] %v999
        %s1049 = sand.u32 %s141, 1
        %s1050 = scalar_lea.sflag [#allocation4], %s1049
        %s1051 = sand.u32 %s141, 1
        %s1052 = smul.addr %s1051, 384
        %s1053 = scalar_lea.vmem [#allocation8], %s1052
        // Predicated region
        $region53: #{tpu_custom_call.1} parent=39 // pred_check
          %p1054 = pneg %p151
        $region54: #{tpu_custom_call.1} parent=39 // pred_check_branch
          %1056 = sbr.rel (%p1054) target = $region56
        $region55: #{tpu_custom_call.1} parent=39 // pred_region
          %s1057 = smul.u32 24, %s23
          %s1059 = ssub.s32 6144, 6144
          %1060 = vsyncadd %s1050, %s1059
          %s1061 = smul.addr %s1057, 2
          %s1062 = smul.addr %s1061, 128
          %s1063 = scalar_lea.hbm %s5, %s1062
          %s1064 = sshll.u32 %s1053, 4
          %s1065 = int_to_ptr.vmem [resolvable:$true] %s1064
          %1070 = dma.vmem_to_hbm [thread:$0]  %s1065, 6144, %s1063, %s1050, 256, 256, 16
        $region56: #{tpu_custom_call.1} parent=39 // pred_fallthru
          _
      $region40: #{tpu_custom_call.1} parent=5 // pred_fallthru
        _
      %p1071 = scmp.le.s32.totalorder 2, %s18
      // Predicated region
      $region57: #{tpu_custom_call.1} parent=5 // pred_check
        %p1072 = pneg %p1071
      $region58: #{tpu_custom_call.1} parent=5 // pred_check_branch
        %1074 = sbr.rel (%p1072) target = $region60
      $region59: #{tpu_custom_call.1} parent=5 // pred_region
        %s1075 = ssub.s32 %s18, 2
        // Predicated region
        $region61: #{tpu_custom_call.1} parent=59 // pred_check
          %p1076 = pneg %p157
        $region62: #{tpu_custom_call.1} parent=59 // pred_check_branch
          %1078 = sbr.rel (%p1076) target = $region64
        $region63: #{tpu_custom_call.1} parent=59 // pred_region
          %s1079 = sand.u32 %s142, 1
          %s1080 = scalar_lea.sflag [#allocation4], %s1079
          %s1081 = sand.u32 %s142, 1
          %s1082 = smul.addr %s1081, 384
          %s1083 = scalar_lea.vmem [#allocation8], %s1082
          %1084 = dma.done %s1080, 6144
        $region64: #{tpu_custom_call.1} parent=59 // pred_fallthru
          _
      $region60: #{tpu_custom_call.1} parent=5 // pred_fallthru
        _
    $region6: #{tpu_custom_call.1} parent=1 // loop_footer
      %s22 = sadd.s32 1, %s18
    $region7: #{tpu_custom_call.1} parent=1 // loop_footer_branch
      %17 = sbr.rel target = $region3
    $region8: #{tpu_custom_call.1} parent=1 // loop_exit
      _
    %1085 = vsyncpa [#allocation3], 1
    %s1086 = scalar_lea.sflag [#allocation3], 1
    %1087 = vsyncpa %s1086, 1
    %1088 = vsyncpa [#allocation6], 1
    %1089 = vsyncpa [#allocation4], 1
    %s1090 = scalar_lea.sflag [#allocation4], 1
    %1091 = vsyncpa %s1090, 1

// kernel: tpu_custom_call.1
$region0: #{tpu_custom_call.1}
  #allocation0 [shape = 'u32[]', space=smem, size = 0x4, offset = 0x4, fixed_abs, tag = 'smem constant byte address 0x4 - core index']
  #allocation1 [shape = 'u32[144,128]{1,0:T(1,128)}', space=vmem, size = 0x12000, scoped, tag = 'internal scratch']
  %s0 = inlined_call_operand.hbm [shape: f32[384,128], index: 0, kind: input, shape index: {}]
  %s1 = inlined_call_operand.hbm [shape: bf16[128,256], index: 1, kind: input, shape index: {}]
  %s2 = inlined_call_operand.vmem [shape: f32[1,256], index: 2, kind: input, shape index: {}]
  %s3 = inlined_call_operand.hbm [shape: bf16[256,256], index: 3, kind: input, shape index: {}]
  %s4 = inlined_call_operand.vmem [shape: f32[1,256], index: 4, kind: input, shape index: {}]
  %s5 = inlined_call_operand.hbm [shape: f32[384,256], index: 5, kind: output, shape index: {}]
  %s6 = sld [smem:[#allocation0]]
  $region65: #{tpu_custom_call.1} parent=0
    _
  %s8 = ssub.s32 1, %s6
  %s9 = scalar_select 0, %s8, %s6
  $region1: #{tpu_custom_call.1} parent=0
    #allocation2 [shape = 'u8[196608]{0}', space=vmem, size = 0x30000, scoped, tag = 'input window, operand 0']
    #allocation3 [shape = 's32[2]{0}', space=sflag, size = 0x8, scoped, tag = 'scoped memory for tpu_custom_call.1']
    #allocation4 [shape = 's32[2]{0}', space=sflag, size = 0x8, scoped, tag = 'scoped memory for tpu_custom_call.1']
    #allocation5 [shape = 'u8[65536]{0}', space=vmem, size = 0x10000, scoped, tag = 'input window, operand 1, single buffered']
    #allocation6 [shape = 's32[1]{0}', space=sflag, size = 0x4, scoped, tag = 'scoped memory for tpu_custom_call.1']
    #allocation7 [shape = 'u8[131072]{0}', space=vmem, size = 0x20000, scoped, tag = 'input window, operand 3, single buffered']
    #allocation8 [shape = 'u8[393216]{0}', space=vmem, size = 0x60000, scoped, tag = 'output window, operand 0']
    %10 = vsyncpa [#allocation3], 0
    %s11 = scalar_lea.sflag [#allocation3], 1
    %12 = vsyncpa %s11, 0
    %13 = vsyncpa [#allocation6], 0
    %14 = vsyncpa [#allocation4], 0
    %s15 = scalar_lea.sflag [#allocation4], 1
    %16 = vsyncpa %s15, 0
    loop: start=0, step=1, limit=4
    $region2: #{tpu_custom_call.1} parent=1 // loop_pre_header
      _
    $region3: #{tpu_custom_call.1} parent=1 // loop_header
      %s18 = sphi 0, %s22
      %p19 = scmp.ge.s32.totalorder %s18, 4
      %s28 = sphi 0, %s30
      %s31 = sphi 0, %s28
      %s32 = sphi 0, %s31
      %s48 = sphi 0, %s32
      %s52 = sphi 0, %s52
      %s54 = sphi 0, %s52
      %s55 = sphi 0, %s54
      %s69 = sphi 0, %s55
      %s73 = sphi 0, %s73
      %s75 = sphi 0, %s73
      %s76 = sphi 0, %s75
      %s90 = sphi 0, %s76
      %s94 = sphi 0, %s94
      %s96 = sphi 0, %s94
      %s97 = sphi 0, %s96
      %s111 = sphi 0, %s97
      %s115 = sphi 0, %s115
      %s117 = sphi 0, %s115
      %s118 = sphi 0, %s117
      %s132 = sphi 0, %s118
      %s138 = sphi 0, %s140
      %s141 = sphi 0, %s138
      %s142 = sphi 0, %s141
      %s158 = sphi 0, %s142
    $region4: #{tpu_custom_call.1} parent=1 // loop_header_branch
      %21 = sbr.rel (%p19) target = $region8
    $region5: #{tpu_custom_call.1} parent=1 // loop_body
      %s23 = ssub.s32 %s18, 1
      %s24 = ssub.s32 %s18, 2
      %s25 = sadd.s32 %s18, 1
      %s26 = ssub.s32 %s18, %s25
      %p27 = scmp.eq.s32.totalorder %s26, 0
      %s29 = sadd.s32 %s28, 1
      %s30 = scalar_select %p27, %s28, %s29
      %p33 = pneg %p27
      %p34 = scmp.eq.s32.totalorder %s18, 1
      %p35 = por %p33, %p34
      %p36 = scmp.ne.s32.totalorder %s28, %s31
      %p37 = scmp.eq.s32.totalorder %s18, 0
      %p38 = por %p36, %p37
      %p39 = scmp.ne.s32.totalorder %s28, %s31
      %p40 = scmp.eq.s32.totalorder %s23, 1
      %p41 = por %p39, %p40
      %p42 = scmp.ne.s32.totalorder %s31, %s32
      %p43 = scmp.eq.s32.totalorder %s23, 0
      %p44 = por %p42, %p43
      %p45 = scmp.ne.s32.totalorder %s31, %s32
      %p46 = scmp.eq.s32.totalorder %s24, 1
      %p47 = por %p45, %p46
      %p49 = scmp.ne.s32.totalorder %s32, %s48
      %p50 = scmp.eq.s32.totalorder %s24, 0
      %p51 = por %p49, %p50
      %s53 = sadd.s32 %s52, 1
      %p56 = scmp.eq.s32.totalorder %s18, 1
      %p57 = scmp.ne.s32.totalorder %s52, %s54
      %p58 = scmp.eq.s32.totalorder %s18, 0
      %p59 = por %p57, %p58
      %p60 = scmp.ne.s32.totalorder %s52, %s54
      %p61 = scmp.eq.s32.totalorder %s23, 1
      %p62 = por %p60, %p61
      %p63 = scmp.ne.s32.totalorder %s54, %s55
      %p64 = scmp.eq.s32.totalorder %s23, 0
      %p65 = por %p63, %p64
      %p66 = scmp.ne.s32.totalorder %s54, %s55
      %p67 = scmp.eq.s32.totalorder %s24, 1
      %p68 = por %p66, %p67
      %p70 = scmp.ne.s32.totalorder %s55, %s69
      %p71 = scmp.eq.s32.totalorder %s24, 0
      %p72 = por %p70, %p71
      %s74 = sadd.s32 %s73, 1
      %p77 = scmp.eq.s32.totalorder %s18, 1
      %p78 = scmp.ne.s32.totalorder %s73, %s75
      %p79 = scmp.eq.s32.totalorder %s18, 0
      %p80 = por %p78, %p79
      %p81 = scmp.ne.s32.totalorder %s73, %s75
      %p82 = scmp.eq.s32.totalorder %s23, 1
      %p83 = por %p81, %p82
      %p84 = scmp.ne.s32.totalorder %s75, %s76
      %p85 = scmp.eq.s32.totalorder %s23, 0
      %p86 = por %p84, %p85
      %p87 = scmp.ne.s32.totalorder %s75, %s76
      %p88 = scmp.eq.s32.totalorder %s24, 1
      %p89 = por %p87, %p88
      %p91 = scmp.ne.s32.totalorder %s76, %s90
      %p92 = scmp.eq.s32.totalorder %s24, 0
      %p93 = por %p91, %p92
      %s95 = sadd.s32 %s94, 1
      %p98 = scmp.eq.s32.totalorder %s18, 1
      %p99 = scmp.ne.s32.totalorder %s94, %s96
      %p100 = scmp.eq.s32.totalorder %s18, 0
      %p101 = por %p99, %p100
      %p102 = scmp.ne.s32.totalorder %s94, %s96
      %p103 = scmp.eq.s32.totalorder %s23, 1
      %p104 = por %p102, %p103
      %p105 = scmp.ne.s32.totalorder %s96, %s97
      %p106 = scmp.eq.s32.totalorder %s23, 0
      %p107 = por %p105, %p106
      %p108 = scmp.ne.s32.totalorder %s96, %s97
      %p109 = scmp.eq.s32.totalorder %s24, 1
      %p110 = por %p108, %p109
      %p112 = scmp.ne.s32.totalorder %s97, %s111
      %p113 = scmp.eq.s32.totalorder %s24, 0
      %p114 = por %p112, %p113
      %s116 = sadd.s32 %s115, 1
      %p119 = scmp.eq.s32.totalorder %s18, 1
      %p120 = scmp.ne.s32.totalorder %s115, %s117
      %p121 = scmp.eq.s32.totalorder %s18, 0
      %p122 = por %p120, %p121
      %p123 = scmp.ne.s32.totalorder %s115, %s117
      %p124 = scmp.eq.s32.totalorder %s23, 1
      %p125 = por %p123, %p124
      %p126 = scmp.ne.s32.totalorder %s117, %s118
      %p127 = scmp.eq.s32.totalorder %s23, 0
      %p128 = por %p126, %p127
      %p129 = scmp.ne.s32.totalorder %s117, %s118
      %p130 = scmp.eq.s32.totalorder %s24, 1
      %p131 = por %p129, %p130
      %p133 = scmp.ne.s32.totalorder %s118, %s132
      %p134 = scmp.eq.s32.totalorder %s24, 0
      %p135 = por %p133, %p134
      %s136 = ssub.s32 %s18, %s25
      %p137 = scmp.eq.s32.totalorder %s136, 0
      %s139 = sadd.s32 %s138, 1
      %s140 = scalar_select %p137, %s138, %s139
      %p143 = pneg %p137
      %p144 = scmp.eq.s32.totalorder %s18, 1
      %p145 = por %p143, %p144
      %p146 = scmp.ne.s32.totalorder %s138, %s141
      %p147 = scmp.eq.s32.totalorder %s18, 0
      %p148 = por %p146, %p147
      %p149 = scmp.ne.s32.totalorder %s138, %s141
      %p150 = scmp.eq.s32.totalorder %s23, 1
      %p151 = por %p149, %p150
      %p152 = scmp.ne.s32.totalorder %s141, %s142
      %p153 = scmp.eq.s32.totalorder %s23, 0
      %p154 = por %p152, %p153
      %p155 = scmp.ne.s32.totalorder %s141, %s142
      %p156 = scmp.eq.s32.totalorder %s24, 1
      %p157 = por %p155, %p156
      %p159 = scmp.ne.s32.totalorder %s142, %s158
      %p160 = scmp.eq.s32.totalorder %s24, 0
      %p161 = por %p159, %p160
      %p162 = scmp.le.s32.totalorder 1, %s18
      %p163 = scmp.lt.s32.totalorder %s18, 3
      %p164 = pnand %p162, %p163
      %p165 = pneg %p164
      // Predicated region
      $region9: #{tpu_custom_call.1} parent=5 // pred_check
        _
      $region10: #{tpu_custom_call.1} parent=5 // pred_check_branch
        %167 = sbr.rel (%p164) target = $region12
      $region11: #{tpu_custom_call.1} parent=5 // pred_region
        %s168 = ssub.s32 %s18, 1
        // Predicated region
        $region13: #{tpu_custom_call.1} parent=11 // pred_check
          %p169 = pneg %p65
        $region14: #{tpu_custom_call.1} parent=11 // pred_check_branch
          %171 = sbr.rel (%p169) target = $region16
        $region15: #{tpu_custom_call.1} parent=11 // pred_region
          %s173 = ssub.s32 2048, 2048
          %174 = vsyncadd [#allocation6], %s173
          %s175 = sshll.u32 [#allocation5], 4
          %s176 = int_to_ptr.vmem [resolvable:$true] %s175
          %181 = dma.hbm_to_vmem [thread:$0]  %s1, 2048, %s176, [#allocation6], 128, 128, 8
        $region16: #{tpu_custom_call.1} parent=11 // pred_fallthru
          _
        // Predicated region
        $region17: #{tpu_custom_call.1} parent=11 // pred_check
          %p182 = pneg %p86
        $region18: #{tpu_custom_call.1} parent=11 // pred_check_branch
          %184 = sbr.rel (%p182) target = $region20
        $region19: #{tpu_custom_call.1} parent=11 // pred_region
          _
        $region20: #{tpu_custom_call.1} parent=11 // pred_fallthru
          _
        // Predicated region
        $region21: #{tpu_custom_call.1} parent=11 // pred_check
          %p185 = pneg %p107
        $region22: #{tpu_custom_call.1} parent=11 // pred_check_branch
          %187 = sbr.rel (%p185) target = $region24
        $region23: #{tpu_custom_call.1} parent=11 // pred_region
          %s189 = ssub.s32 4096, 4096
          %190 = vsyncadd [#allocation6], %s189
          %s191 = sshll.u32 [#allocation7], 4
          %s192 = int_to_ptr.vmem [resolvable:$true] %s191
          %197 = dma.hbm_to_vmem [thread:$0]  %s3, 4096, %s192, [#allocation6], 128, 128, 8
        $region24: #{tpu_custom_call.1} parent=11 // pred_fallthru
          _
        // Predicated region
        $region25: #{tpu_custom_call.1} parent=11 // pred_check
          %p198 = pneg %p128
        $region26: #{tpu_custom_call.1} parent=11 // pred_check_branch
          %200 = sbr.rel (%p198) target = $region28
        $region27: #{tpu_custom_call.1} parent=11 // pred_region
          _
        $region28: #{tpu_custom_call.1} parent=11 // pred_fallthru
          _
      $region12: #{tpu_custom_call.1} parent=5 // pred_fallthru
        _
      %p201 = scmp.lt.s32.totalorder %s18, 2
      // Predicated region
      $region29: #{tpu_custom_call.1} parent=5 // pred_check
        %p202 = pneg %p201
      $region30: #{tpu_custom_call.1} parent=5 // pred_check_branch
        %204 = sbr.rel (%p202) target = $region32
      $region31: #{tpu_custom_call.1} parent=5 // pred_region
        // Predicated region
        $region33: #{tpu_custom_call.1} parent=31 // pred_check
          %p205 = pneg %p38
        $region34: #{tpu_custom_call.1} parent=31 // pred_check_branch
          %207 = sbr.rel (%p205) target = $region36
        $region35: #{tpu_custom_call.1} parent=31 // pred_region
          %s208 = sand.u32 %s28, 1
          %s209 = scalar_lea.sflag [#allocation3], %s208
          %s210 = sand.u32 %s28, 1
          %s211 = smul.addr %s210, 192
          %s212 = scalar_lea.vmem [#allocation2], %s211
          %s213 = smul.u32 24, %s18
          %s215 = ssub.s32 3072, 3072
          %216 = vsyncadd %s209, %s215
          %s217 = smul.addr %s213, 128
          %s218 = scalar_lea.hbm %s0, %s217
          %s219 = sshll.u32 %s212, 4
          %s220 = int_to_ptr.vmem [resolvable:$true] %s219
          %225 = dma.hbm_to_vmem [thread:$0]  %s218, 3072, %s220, %s209, 128, 128, 8
        $region36: #{tpu_custom_call.1} parent=31 // pred_fallthru
          _
      $region32: #{tpu_custom_call.1} parent=5 // pred_fallthru
        _
      %p226 = scmp.le.s32.totalorder 1, %s18
      %p227 = scmp.lt.s32.totalorder %s18, 3
      %p228 = pnand %p226, %p227
      %p229 = pneg %p228
      // Predicated region
      $region37: #{tpu_custom_call.1} parent=5 // pred_check
        _
      $region38: #{tpu_custom_call.1} parent=5 // pred_check_branch
        %231 = sbr.rel (%p228) target = $region40
      $region39: #{tpu_custom_call.1} parent=5 // pred_region
        %s232 = ssub.s32 %s18, 1
        %s233 = sand.u32 %s31, 1
        %s234 = scalar_lea.sflag [#allocation3], %s233
        %s235 = sand.u32 %s31, 1
        %s236 = smul.addr %s235, 192
        %s237 = scalar_lea.vmem [#allocation2], %s236
        // Predicated region
        $region41: #{tpu_custom_call.1} parent=39 // pred_check
          %p238 = pneg %p44
        $region42: #{tpu_custom_call.1} parent=39 // pred_check_branch
          %240 = sbr.rel (%p238) target = $region44
        $region43: #{tpu_custom_call.1} parent=39 // pred_region
          %241 = dma.done %s234, 3072
        $region44: #{tpu_custom_call.1} parent=39 // pred_fallthru
          _
        // Predicated region
        $region45: #{tpu_custom_call.1} parent=39 // pred_check
          %p242 = pneg %p65
        $region46: #{tpu_custom_call.1} parent=39 // pred_check_branch
          %244 = sbr.rel (%p242) target = $region48
        $region47: #{tpu_custom_call.1} parent=39 // pred_region
          %245 = dma.done [#allocation6], 2048
        $region48: #{tpu_custom_call.1} parent=39 // pred_fallthru
          _
        // Predicated region
        $region49: #{tpu_custom_call.1} parent=39 // pred_check
          %p246 = pneg %p107
        $region50: #{tpu_custom_call.1} parent=39 // pred_check_branch
          %248 = sbr.rel (%p246) target = $region52
        $region51: #{tpu_custom_call.1} parent=39 // pred_region
          %249 = dma.done [#allocation6], 4096
        $region52: #{tpu_custom_call.1} parent=39 // pred_fallthru
          _
        %s250 = sand.u32 %s31, 1
        %s251 = scalar_lea.sflag [#allocation3], %s250
        %s252 = sand.u32 %s31, 1
        %s253 = smul.addr %s252, 192
        %s254 = scalar_lea.vmem [#allocation2], %s253
        %p255 = pneg %p44
        %p256 = pneg %p41
        %p257 = pneg %p65
        %p258 = pneg %p62
        %p259 = pneg %p86
        %p260 = pneg %p83
        %p261 = pneg %p107
        %p262 = pneg %p104
        %p263 = pneg %p128
        %p264 = pneg %p125
        %p265 = pneg %p154
        %p266 = pneg %p151
        %s267 = sand.u32 %s141, 1
        %s268 = scalar_lea.sflag [#allocation4], %s267
        %s269 = sand.u32 %s141, 1
        %s270 = smul.addr %s269, 384
        %s271 = scalar_lea.vmem [#allocation8], %s270
        %s272 = smul.u32 24, %s23
        %s273 = smul.u32 24, %s23
        %v275 = vld [vmem:[%s237] sm:$0xff]
        %v276 = vld [vmem:[%s237 + $0x8] sm:$0xff]
        %v277 = vld [vmem:[%s237 + $0x10] sm:$0xff]
        %v278 = vld [vmem:[%s237 + $0x18] sm:$0xff]
        %v279 = vld [vmem:[%s237 + $0x20] sm:$0xff]
        %v280 = vld [vmem:[%s237 + $0x28] sm:$0xff]
        %v281 = vld [vmem:[%s237 + $0x30] sm:$0xff]
        %v282 = vld [vmem:[%s237 + $0x38] sm:$0xff]
        %v283 = vld [vmem:[%s237 + $0x40] sm:$0xff]
        %v284 = vld [vmem:[%s237 + $0x48] sm:$0xff]
        %v285 = vld [vmem:[%s237 + $0x50] sm:$0xff]
        %v286 = vld [vmem:[%s237 + $0x58] sm:$0xff]
        %v287 = vld [vmem:[%s237 + $0x60] sm:$0xff]
        %v288 = vld [vmem:[%s237 + $0x68] sm:$0xff]
        %v289 = vld [vmem:[%s237 + $0x70] sm:$0xff]
        %v290 = vld [vmem:[%s237 + $0x78] sm:$0xff]
        %v291 = vld [vmem:[%s237 + $0x80] sm:$0xff]
        %v292 = vld [vmem:[%s237 + $0x88] sm:$0xff]
        %v293 = vld [vmem:[%s237 + $0x90] sm:$0xff]
        %v294 = vld [vmem:[%s237 + $0x98] sm:$0xff]
        %v295 = vld [vmem:[%s237 + $0xa0] sm:$0xff]
        %v296 = vld [vmem:[%s237 + $0xa8] sm:$0xff]
        %v297 = vld [vmem:[%s237 + $0xb0] sm:$0xff]
        %v298 = vld [vmem:[%s237 + $0xb8] sm:$0xff]
        %v299 = vpack.c.bf16 %v276, %v275
        %v300 = vpack.c.bf16 %v278, %v277
        %v301 = vpack.c.bf16 %v280, %v279
        %v302 = vpack.c.bf16 %v282, %v281
        %v303 = vpack.c.bf16 %v284, %v283
        %v304 = vpack.c.bf16 %v286, %v285
        %v305 = vpack.c.bf16 %v288, %v287
        %v306 = vpack.c.bf16 %v290, %v289
        %v307 = vpack.c.bf16 %v292, %v291
        %v308 = vpack.c.bf16 %v294, %v293
        %v309 = vpack.c.bf16 %v296, %v295
        %v310 = vpack.c.bf16 %v298, %v297
        %v311 = vld [vmem:[#allocation5] sm:$0xff]
        %v312 = vld [vmem:[#allocation5 + $0x8] sm:$0xff]
        %v313 = vld [vmem:[#allocation5 + $0x10] sm:$0xff]
        %v314 = vld [vmem:[#allocation5 + $0x18] sm:$0xff]
        %v315 = vld [vmem:[#allocation5 + $0x20] sm:$0xff]
        %v316 = vld [vmem:[#allocation5 + $0x28] sm:$0xff]
        %v317 = vld [vmem:[#allocation5 + $0x30] sm:$0xff]
        %v318 = vld [vmem:[#allocation5 + $0x38] sm:$0xff]
        %v319 = vld [vmem:[#allocation5 + $0x40] sm:$0xff]
        %v320 = vld [vmem:[#allocation5 + $0x48] sm:$0xff]
        %v321 = vld [vmem:[#allocation5 + $0x50] sm:$0xff]
        %v322 = vld [vmem:[#allocation5 + $0x58] sm:$0xff]
        %v323 = vld [vmem:[#allocation5 + $0x60] sm:$0xff]
        %v324 = vld [vmem:[#allocation5 + $0x68] sm:$0xff]
        %v325 = vld [vmem:[#allocation5 + $0x70] sm:$0xff]
        %v326 = vld [vmem:[#allocation5 + $0x78] sm:$0xff]
        %v327 = vld [vmem:[%s2] sm:$0x3]
        %v329 = vlaneseq
        %v330 = vshrl.u32 %v329, 7
        %v331 = vsub.s32 0, %v330
        %v332 = vrot.slane %v327, %v331
        %v333 = vlaneseq
        %v334 = vshrl.u32 %v333, 7
        %v335 = vsub.s32 1, %v334
        %v336 = vrot.slane %v327, %v335
        %v355 = vunpack.c.l.b16 %v311
        %v356 = vunpack.c.h.b16 %v311
        %v357 = vunpack.c.l.b16 %v312
        %v358 = vunpack.c.h.b16 %v312
        %v359 = vunpack.c.l.b16 %v313
        %v360 = vunpack.c.h.b16 %v313
        %v361 = vunpack.c.l.b16 %v314
        %v362 = vunpack.c.h.b16 %v314
        %v363 = vunpack.c.l.b16 %v315
        %v364 = vunpack.c.h.b16 %v315
        %v365 = vunpack.c.l.b16 %v316
        %v366 = vunpack.c.h.b16 %v316
        %v367 = vunpack.c.l.b16 %v317
        %v368 = vunpack.c.h.b16 %v317
        %v369 = vunpack.c.l.b16 %v318
        %v370 = vunpack.c.h.b16 %v318
        %v371 = vunpack.c.l.b16 %v319
        %v372 = vunpack.c.h.b16 %v319
        %v373 = vunpack.c.l.b16 %v320
        %v374 = vunpack.c.h.b16 %v320
        %v375 = vunpack.c.l.b16 %v321
        %v376 = vunpack.c.h.b16 %v321
        %v377 = vunpack.c.l.b16 %v322
        %v378 = vunpack.c.h.b16 %v322
        %v379 = vunpack.c.l.b16 %v323
        %v380 = vunpack.c.h.b16 %v323
        %v381 = vunpack.c.l.b16 %v324
        %v382 = vunpack.c.h.b16 %v324
        %v383 = vunpack.c.l.b16 %v325
        %v384 = vunpack.c.h.b16 %v325
        %v385 = vunpack.c.l.b16 %v326
        %v386 = vunpack.c.h.b16 %v326
        %v387 = vpack.c.b16 %v357, %v355
        %v388 = vpack.c.b16 %v358, %v356
        %v389 = vpack.c.b16 %v361, %v359
        %v390 = vpack.c.b16 %v362, %v360
        %v391 = vpack.c.b16 %v365, %v363
        %v392 = vpack.c.b16 %v366, %v364
        %v393 = vpack.c.b16 %v369, %v367
        %v394 = vpack.c.b16 %v370, %v368
        %v395 = vpack.c.b16 %v373, %v371
        %v396 = vpack.c.b16 %v374, %v372
        %v397 = vpack.c.b16 %v377, %v375
        %v398 = vpack.c.b16 %v378, %v376
        %v399 = vpack.c.b16 %v381, %v379
        %v400 = vpack.c.b16 %v382, %v380
        %v401 = vpack.c.b16 %v385, %v383
        %v402 = vpack.c.b16 %v386, %v384
        %419 = vmatprep.subr.bf16.mxu0 %v388
        %420 = vmatpush1.bf16.msra.mxu0 %v387
        %421 = vmatprep.subr.bf16.mxu0 %v390
        %422 = vmatpush1.bf16.msra.mxu0 %v389
        %423 = vmatprep.subr.bf16.mxu0 %v392
        %424 = vmatpush1.bf16.msra.mxu0 %v391
        %425 = vmatprep.subr.bf16.mxu0 %v394
        %426 = vmatpush1.bf16.msra.mxu0 %v393
        %427 = vmatprep.subr.bf16.mxu0 %v396
        %428 = vmatpush1.bf16.msra.mxu0 %v395
        %429 = vmatprep.subr.bf16.mxu0 %v398
        %430 = vmatpush1.bf16.msra.mxu0 %v397
        %431 = vmatprep.subr.bf16.mxu0 %v400
        %432 = vmatpush1.bf16.msra.mxu0 %v399
        %433 = vmatprep.subr.bf16.mxu0 %v402
        %434 = vmatpush1.bf16.msra.mxu0 %v401
        %435 = vmatprep.subr.bf16.mxu0 0
        %436 = vmatpush1.bf16.msra.mxu0 0
        %437 = vmatprep.subr.bf16.mxu0 0
        %438 = vmatpush1.bf16.msra.mxu0 0
        %439 = vmatprep.subr.bf16.mxu0 0
        %440 = vmatpush1.bf16.msra.mxu0 0
        %441 = vmatprep.subr.bf16.mxu0 0
        %442 = vmatpush1.bf16.msra.mxu0 0
        %443 = vmatprep.subr.bf16.mxu0 0
        %444 = vmatpush1.bf16.msra.mxu0 0
        %445 = vmatprep.subr.bf16.mxu0 0
        %446 = vmatpush1.bf16.msra.mxu0 0
        %447 = vmatprep.subr.bf16.mxu0 0
        %448 = vmatpush1.bf16.msra.mxu0 0
        %449 = vmatprep.subr.bf16.mxu0 0
        %450 = vmatpush1.bf16.msra.mxu0 0
        %451 = vmatprep.mubr.bf16.mxu0 0
        %452 = vmatmul.mubr.bf16.gmra.mrb[0].mxu0 %v299
        %v453 = vpop.f32.mrb[0].mxu0
        %v454 = vadd.f32 %v332, %v453
        %v455 = vpop.f32.mrb[0].mxu0
        %v456 = vadd.f32 %v336, %v455
        %v457 = vpop.f32.mrb[0].mxu0
        %v458 = vadd.f32 %v332, %v457
        %v459 = vpop.f32.mrb[0].mxu0
        %v460 = vadd.f32 %v336, %v459
        %461 = vmatprep.mubr.bf16.mxu0 0
        %462 = vmatmul.mubr.bf16.gmra.mrb[0].mxu0 %v300
        %v463 = vpop.f32.mrb[0].mxu0
        %v464 = vadd.f32 %v332, %v463
        %v465 = vpop.f32.mrb[0].mxu0
        %v466 = vadd.f32 %v336, %v465
        %v467 = vpop.f32.mrb[0].mxu0
        %v468 = vadd.f32 %v332, %v467
        %v469 = vpop.f32.mrb[0].mxu0
        %v470 = vadd.f32 %v336, %v469
        %471 = vmatprep.mubr.bf16.mxu0 0
        %472 = vmatmul.mubr.bf16.gmra.mrb[0].mxu0 %v301
        %v473 = vpop.f32.mrb[0].mxu0
        %v474 = vadd.f32 %v332, %v473
        %v475 = vpop.f32.mrb[0].mxu0
        %v476 = vadd.f32 %v336, %v475
        %v477 = vpop.f32.mrb[0].mxu0
        %v478 = vadd.f32 %v332, %v477
        %v479 = vpop.f32.mrb[0].mxu0
        %v480 = vadd.f32 %v336, %v479
        %481 = vmatprep.mubr.bf16.mxu0 0
        %482 = vmatmul.mubr.bf16.gmra.mrb[0].mxu0 %v302
        %v483 = vpop.f32.mrb[0].mxu0
        %v484 = vadd.f32 %v332, %v483
        %v485 = vpop.f32.mrb[0].mxu0
        %v486 = vadd.f32 %v336, %v485
        %v487 = vpop.f32.mrb[0].mxu0
        %v488 = vadd.f32 %v332, %v487
        %v489 = vpop.f32.mrb[0].mxu0
        %v490 = vadd.f32 %v336, %v489
        %491 = vmatprep.mubr.bf16.mxu0 0
        %492 = vmatmul.mubr.bf16.gmra.mrb[0].mxu0 %v303
        %v493 = vpop.f32.mrb[0].mxu0
        %v494 = vadd.f32 %v332, %v493
        %v495 = vpop.f32.mrb[0].mxu0
        %v496 = vadd.f32 %v336, %v495
        %v497 = vpop.f32.mrb[0].mxu0
        %v498 = vadd.f32 %v332, %v497
        %v499 = vpop.f32.mrb[0].mxu0
        %v500 = vadd.f32 %v336, %v499
        %501 = vmatprep.mubr.bf16.mxu0 0
        %502 = vmatmul.mubr.bf16.gmra.mrb[0].mxu0 %v304
        %v503 = vpop.f32.mrb[0].mxu0
        %v504 = vadd.f32 %v332, %v503
        %v505 = vpop.f32.mrb[0].mxu0
        %v506 = vadd.f32 %v336, %v505
        %v507 = vpop.f32.mrb[0].mxu0
        %v508 = vadd.f32 %v332, %v507
        %v509 = vpop.f32.mrb[0].mxu0
        %v510 = vadd.f32 %v336, %v509
        %511 = vmatprep.mubr.bf16.mxu0 0
        %512 = vmatmul.mubr.bf16.gmra.mrb[0].mxu0 %v305
        %v513 = vpop.f32.mrb[0].mxu0
        %v514 = vadd.f32 %v332, %v513
        %v515 = vpop.f32.mrb[0].mxu0
        %v516 = vadd.f32 %v336, %v515
        %v517 = vpop.f32.mrb[0].mxu0
        %v518 = vadd.f32 %v332, %v517
        %v519 = vpop.f32.mrb[0].mxu0
        %v520 = vadd.f32 %v336, %v519
        %521 = vmatprep.mubr.bf16.mxu0 0
        %522 = vmatmul.mubr.bf16.gmra.mrb[0].mxu0 %v306
        %v523 = vpop.f32.mrb[0].mxu0
        %v524 = vadd.f32 %v332, %v523
        %v525 = vpop.f32.mrb[0].mxu0
        %v526 = vadd.f32 %v336, %v525
        %v527 = vpop.f32.mrb[0].mxu0
        %v528 = vadd.f32 %v332, %v527
        %v529 = vpop.f32.mrb[0].mxu0
        %v530 = vadd.f32 %v336, %v529
        %531 = vmatprep.mubr.bf16.mxu0 0
        %532 = vmatmul.mubr.bf16.gmra.mrb[0].mxu0 %v307
        %v533 = vpop.f32.mrb[0].mxu0
        %v534 = vadd.f32 %v332, %v533
        %v535 = vpop.f32.mrb[0].mxu0
        %v536 = vadd.f32 %v336, %v535
        %v537 = vpop.f32.mrb[0].mxu0
        %v538 = vadd.f32 %v332, %v537
        %v539 = vpop.f32.mrb[0].mxu0
        %v540 = vadd.f32 %v336, %v539
        %541 = vmatprep.mubr.bf16.mxu0 0
        %542 = vmatmul.mubr.bf16.gmra.mrb[0].mxu0 %v308
        %v543 = vpop.f32.mrb[0].mxu0
        %v544 = vadd.f32 %v332, %v543
        %v545 = vpop.f32.mrb[0].mxu0
        %v546 = vadd.f32 %v336, %v545
        %v547 = vpop.f32.mrb[0].mxu0
        %v548 = vadd.f32 %v332, %v547
        %v549 = vpop.f32.mrb[0].mxu0
        %v550 = vadd.f32 %v336, %v549
        %551 = vmatprep.mubr.bf16.mxu0 0
        %552 = vmatmul.mubr.bf16.gmra.mrb[0].mxu0 %v309
        %v553 = vpop.f32.mrb[0].mxu0
        %v554 = vadd.f32 %v332, %v553
        %v555 = vpop.f32.mrb[0].mxu0
        %v556 = vadd.f32 %v336, %v555
        %v557 = vpop.f32.mrb[0].mxu0
        %v558 = vadd.f32 %v332, %v557
        %v559 = vpop.f32.mrb[0].mxu0
        %v560 = vadd.f32 %v336, %v559
        %561 = vmatprep.mubr.bf16.mxu0 0
        %562 = vmatmul.mubr.bf16.gmra.mrb[0].mxu0 %v310
        %v563 = vpop.f32.mrb[0].mxu0
        %v564 = vadd.f32 %v332, %v563
        %v565 = vpop.f32.mrb[0].mxu0
        %v566 = vadd.f32 %v336, %v565
        %v567 = vpop.f32.mrb[0].mxu0
        %v568 = vadd.f32 %v332, %v567
        %v569 = vpop.f32.mrb[0].mxu0
        %v570 = vadd.f32 %v336, %v569
        %571 = vdwg.mxu0
        %v572 = vmax.f32 %v454, 0.0
        %v573 = vmax.f32 %v456, 0.0
        %v574 = vmax.f32 %v458, 0.0
        %v575 = vmax.f32 %v460, 0.0
        %v576 = vmax.f32 %v464, 0.0
        %v577 = vmax.f32 %v466, 0.0
        %v578 = vmax.f32 %v468, 0.0
        %v579 = vmax.f32 %v470, 0.0
        %v580 = vmax.f32 %v474, 0.0
        %v581 = vmax.f32 %v476, 0.0
        %v582 = vmax.f32 %v478, 0.0
        %v583 = vmax.f32 %v480, 0.0
        %v584 = vmax.f32 %v484, 0.0
        %v585 = vmax.f32 %v486, 0.0
        %v586 = vmax.f32 %v488, 0.0
        %v587 = vmax.f32 %v490, 0.0
        %v588 = vmax.f32 %v494, 0.0
        %v589 = vmax.f32 %v496, 0.0
        %v590 = vmax.f32 %v498, 0.0
        %v591 = vmax.f32 %v500, 0.0
        %v592 = vmax.f32 %v504, 0.0
        %v593 = vmax.f32 %v506, 0.0
        %v594 = vmax.f32 %v508, 0.0
        %v595 = vmax.f32 %v510, 0.0
        %v596 = vmax.f32 %v514, 0.0
        %v597 = vmax.f32 %v516, 0.0
        %v598 = vmax.f32 %v518, 0.0
        %v599 = vmax.f32 %v520, 0.0
        %v600 = vmax.f32 %v524, 0.0
        %v601 = vmax.f32 %v526, 0.0
        %v602 = vmax.f32 %v528, 0.0
        %v603 = vmax.f32 %v530, 0.0
        %v604 = vmax.f32 %v534, 0.0
        %v605 = vmax.f32 %v536, 0.0
        %v606 = vmax.f32 %v538, 0.0
        %v607 = vmax.f32 %v540, 0.0
        %v608 = vmax.f32 %v544, 0.0
        %v609 = vmax.f32 %v546, 0.0
        %v610 = vmax.f32 %v548, 0.0
        %v611 = vmax.f32 %v550, 0.0
        %v612 = vmax.f32 %v554, 0.0
        %v613 = vmax.f32 %v556, 0.0
        %v614 = vmax.f32 %v558, 0.0
        %v615 = vmax.f32 %v560, 0.0
        %v616 = vmax.f32 %v564, 0.0
        %v617 = vmax.f32 %v566, 0.0
        %v618 = vmax.f32 %v568, 0.0
        %v619 = vmax.f32 %v570, 0.0
        %v620 = vpack.c.bf16 %v574, %v572
        %v621 = vpack.c.bf16 %v575, %v573
        %v622 = vpack.c.bf16 %v578, %v576
        %v623 = vpack.c.bf16 %v579, %v577
        %v624 = vpack.c.bf16 %v582, %v580
        %v625 = vpack.c.bf16 %v583, %v581
        %v626 = vpack.c.bf16 %v586, %v584
        %v627 = vpack.c.bf16 %v587, %v585
        %v628 = vpack.c.bf16 %v590, %v588
        %v629 = vpack.c.bf16 %v591, %v589
        %v630 = vpack.c.bf16 %v594, %v592
        %v631 = vpack.c.bf16 %v595, %v593
        %v632 = vpack.c.bf16 %v598, %v596
        %v633 = vpack.c.bf16 %v599, %v597
        %v634 = vpack.c.bf16 %v602, %v600
        %v635 = vpack.c.bf16 %v603, %v601
        %v636 = vpack.c.bf16 %v606, %v604
        %v637 = vpack.c.bf16 %v607, %v605
        %v638 = vpack.c.bf16 %v610, %v608
        %v639 = vpack.c.bf16 %v611, %v609
        %v640 = vpack.c.bf16 %v614, %v612
        %v641 = vpack.c.bf16 %v615, %v613
        %v642 = vpack.c.bf16 %v618, %v616
        %v643 = vpack.c.bf16 %v619, %v617
        %v644 = vld [vmem:[#allocation7] sm:$0xff]
        %v645 = vld [vmem:[#allocation7 + $0x8] sm:$0xff]
        %v646 = vld [vmem:[#allocation7 + $0x10] sm:$0xff]
        %v647 = vld [vmem:[#allocation7 + $0x18] sm:$0xff]
        %v648 = vld [vmem:[#allocation7 + $0x20] sm:$0xff]
        %v649 = vld [vmem:[#allocation7 + $0x28] sm:$0xff]
        %v650 = vld [vmem:[#allocation7 + $0x30] sm:$0xff]
        %v651 = vld [vmem:[#allocation7 + $0x38] sm:$0xff]
        %v652 = vld [vmem:[#allocation7 + $0x40] sm:$0xff]
        %v653 = vld [vmem:[#allocation7 + $0x48] sm:$0xff]
        %v654 = vld [vmem:[#allocation7 + $0x50] sm:$0xff]
        %v655 = vld [vmem:[#allocation7 + $0x58] sm:$0xff]
        %v656 = vld [vmem:[#allocation7 + $0x60] sm:$0xff]
        %v657 = vld [vmem:[#allocation7 + $0x68] sm:$0xff]
        %v658 = vld [vmem:[#allocation7 + $0x70] sm:$0xff]
        %v659 = vld [vmem:[#allocation7 + $0x78] sm:$0xff]
        %v660 = vld [vmem:[#allocation7 + $0x80] sm:$0xff]
        %v661 = vld [vmem:[#allocation7 + $0x88] sm:$0xff]
        %v662 = vld [vmem:[#allocation7 + $0x90] sm:$0xff]
        %v663 = vld [vmem:[#allocation7 + $0x98] sm:$0xff]
        %v664 = vld [vmem:[#allocation7 + $0xa0] sm:$0xff]
        %v665 = vld [vmem:[#allocation7 + $0xa8] sm:$0xff]
        %v666 = vld [vmem:[#allocation7 + $0xb0] sm:$0xff]
        %v667 = vld [vmem:[#allocation7 + $0xb8] sm:$0xff]
        %v668 = vld [vmem:[#allocation7 + $0xc0] sm:$0xff]
        %v669 = vld [vmem:[#allocation7 + $0xc8] sm:$0xff]
        %v670 = vld [vmem:[#allocation7 + $0xd0] sm:$0xff]
        %v671 = vld [vmem:[#allocation7 + $0xd8] sm:$0xff]
        %v672 = vld [vmem:[#allocation7 + $0xe0] sm:$0xff]
        %v673 = vld [vmem:[#allocation7 + $0xe8] sm:$0xff]
        %v674 = vld [vmem:[#allocation7 + $0xf0] sm:$0xff]
        %v675 = vld [vmem:[#allocation7 + $0xf8] sm:$0xff]
        %v676 = vld [vmem:[%s4] sm:$0x3]
        %v678 = vlaneseq
        %v679 = vshrl.u32 %v678, 7
        %v680 = vsub.s32 0, %v679
        %v681 = vrot.slane %v676, %v680
        %v682 = vlaneseq
        %v683 = vshrl.u32 %v682, 7
        %v684 = vsub.s32 1, %v683
        %v685 = vrot.slane %v676, %v684
        %v720 = vunpack.c.l.b16 %v644
        %v721 = vunpack.c.h.b16 %v644
        %v722 = vunpack.c.l.b16 %v645
        %v723 = vunpack.c.h.b16 %v645
        %v724 = vunpack.c.l.b16 %v646
        %v725 = vunpack.c.h.b16 %v646
        %v726 = vunpack.c.l.b16 %v647
        %v727 = vunpack.c.h.b16 %v647
        %v728 = vunpack.c.l.b16 %v648
        %v729 = vunpack.c.h.b16 %v648
        %v730 = vunpack.c.l.b16 %v649
        %v731 = vunpack.c.h.b16 %v649
        %v732 = vunpack.c.l.b16 %v650
        %v733 = vunpack.c.h.b16 %v650
        %v734 = vunpack.c.l.b16 %v651
        %v735 = vunpack.c.h.b16 %v651
        %v736 = vunpack.c.l.b16 %v652
        %v737 = vunpack.c.h.b16 %v652
        %v738 = vunpack.c.l.b16 %v653
        %v739 = vunpack.c.h.b16 %v653
        %v740 = vunpack.c.l.b16 %v654
        %v741 = vunpack.c.h.b16 %v654
        %v742 = vunpack.c.l.b16 %v655
        %v743 = vunpack.c.h.b16 %v655
        %v744 = vunpack.c.l.b16 %v656
        %v745 = vunpack.c.h.b16 %v656
        %v746 = vunpack.c.l.b16 %v657
        %v747 = vunpack.c.h.b16 %v657
        %v748 = vunpack.c.l.b16 %v658
        %v749 = vunpack.c.h.b16 %v658
        %v750 = vunpack.c.l.b16 %v659
        %v751 = vunpack.c.h.b16 %v659
        %v752 = vunpack.c.l.b16 %v660
        %v753 = vunpack.c.h.b16 %v660
        %v754 = vunpack.c.l.b16 %v661
        %v755 = vunpack.c.h.b16 %v661
        %v756 = vunpack.c.l.b16 %v662
        %v757 = vunpack.c.h.b16 %v662
        %v758 = vunpack.c.l.b16 %v663
        %v759 = vunpack.c.h.b16 %v663
        %v760 = vunpack.c.l.b16 %v664
        %v761 = vunpack.c.h.b16 %v664
        %v762 = vunpack.c.l.b16 %v665
        %v763 = vunpack.c.h.b16 %v665
        %v764 = vunpack.c.l.b16 %v666
        %v765 = vunpack.c.h.b16 %v666
        %v766 = vunpack.c.l.b16 %v667
        %v767 = vunpack.c.h.b16 %v667
        %v768 = vunpack.c.l.b16 %v668
        %v769 = vunpack.c.h.b16 %v668
        %v770 = vunpack.c.l.b16 %v669
        %v771 = vunpack.c.h.b16 %v669
        %v772 = vunpack.c.l.b16 %v670
        %v773 = vunpack.c.h.b16 %v670
        %v774 = vunpack.c.l.b16 %v671
        %v775 = vunpack.c.h.b16 %v671
        %v776 = vunpack.c.l.b16 %v672
        %v777 = vunpack.c.h.b16 %v672
        %v778 = vunpack.c.l.b16 %v673
        %v779 = vunpack.c.h.b16 %v673
        %v780 = vunpack.c.l.b16 %v674
        %v781 = vunpack.c.h.b16 %v674
        %v782 = vunpack.c.l.b16 %v675
        %v783 = vunpack.c.h.b16 %v675
        %v784 = vpack.c.b16 %v722, %v720
        %v785 = vpack.c.b16 %v723, %v721
        %v786 = vpack.c.b16 %v726, %v724
        %v787 = vpack.c.b16 %v727, %v725
        %v788 = vpack.c.b16 %v730, %v728
        %v789 = vpack.c.b16 %v731, %v729
        %v790 = vpack.c.b16 %v734, %v732
        %v791 = vpack.c.b16 %v735, %v733
        %v792 = vpack.c.b16 %v738, %v736
        %v793 = vpack.c.b16 %v739, %v737
        %v794 = vpack.c.b16 %v742, %v740
        %v795 = vpack.c.b16 %v743, %v741
        %v796 = vpack.c.b16 %v746, %v744
        %v797 = vpack.c.b16 %v747, %v745
        %v798 = vpack.c.b16 %v750, %v748
        %v799 = vpack.c.b16 %v751, %v749
        %v800 = vpack.c.b16 %v754, %v752
        %v801 = vpack.c.b16 %v755, %v753
        %v802 = vpack.c.b16 %v758, %v756
        %v803 = vpack.c.b16 %v759, %v757
        %v804 = vpack.c.b16 %v762, %v760
        %v805 = vpack.c.b16 %v763, %v761
        %v806 = vpack.c.b16 %v766, %v764
        %v807 = vpack.c.b16 %v767, %v765
        %v808 = vpack.c.b16 %v770, %v768
        %v809 = vpack.c.b16 %v771, %v769
        %v810 = vpack.c.b16 %v774, %v772
        %v811 = vpack.c.b16 %v775, %v773
        %v812 = vpack.c.b16 %v778, %v776
        %v813 = vpack.c.b16 %v779, %v777
        %v814 = vpack.c.b16 %v782, %v780
        %v815 = vpack.c.b16 %v783, %v781
        %848 = vmatprep.subr.bf16.mxu0 %v785
        %849 = vmatpush1.bf16.msra.mxu0 %v784
        %850 = vmatprep.subr.bf16.mxu0 %v787
        %851 = vmatpush1.bf16.msra.mxu0 %v786
        %852 = vmatprep.subr.bf16.mxu0 %v789
        %853 = vmatpush1.bf16.msra.mxu0 %v788
        %854 = vmatprep.subr.bf16.mxu0 %v791
        %855 = vmatpush1.bf16.msra.mxu0 %v790
        %856 = vmatprep.subr.bf16.mxu0 %v793
        %857 = vmatpush1.bf16.msra.mxu0 %v792
        %858 = vmatprep.subr.bf16.mxu0 %v795
        %859 = vmatpush1.bf16.msra.mxu0 %v794
        %860 = vmatprep.subr.bf16.mxu0 %v797
        %861 = vmatpush1.bf16.msra.mxu0 %v796
        %862 = vmatprep.subr.bf16.mxu0 %v799
        %863 = vmatpush1.bf16.msra.mxu0 %v798
        %864 = vmatprep.subr.bf16.mxu0 %v801
        %865 = vmatpush1.bf16.msra.mxu0 %v800
        %866 = vmatprep.subr.bf16.mxu0 %v803
        %867 = vmatpush1.bf16.msra.mxu0 %v802
        %868 = vmatprep.subr.bf16.mxu0 %v805
        %869 = vmatpush1.bf16.msra.mxu0 %v804
        %870 = vmatprep.subr.bf16.mxu0 %v807
        %871 = vmatpush1.bf16.msra.mxu0 %v806
        %872 = vmatprep.subr.bf16.mxu0 %v809
        %873 = vmatpush1.bf16.msra.mxu0 %v808
        %874 = vmatprep.subr.bf16.mxu0 %v811
        %875 = vmatpush1.bf16.msra.mxu0 %v810
        %876 = vmatprep.subr.bf16.mxu0 %v813
        %877 = vmatpush1.bf16.msra.mxu0 %v812
        %878 = vmatprep.subr.bf16.mxu0 %v815
        %879 = vmatpush1.bf16.msra.mxu0 %v814
        %880 = vmatprep.mubr.bf16.mxu0 %v621
        %881 = vmatmul.mubr.bf16.gmra.mrb[0].mxu0 %v620
        %v882 = vpop.f32.mrb[0].mxu0
        %v883 = vadd.f32 %v681, %v882
        %v884 = vpop.f32.mrb[0].mxu0
        %v885 = vadd.f32 %v685, %v884
        %v886 = vpop.f32.mrb[0].mxu0
        %v887 = vadd.f32 %v681, %v886
        %v888 = vpop.f32.mrb[0].mxu0
        %v889 = vadd.f32 %v685, %v888
        %890 = vmatprep.mubr.bf16.mxu0 %v623
        %891 = vmatmul.mubr.bf16.gmra.mrb[0].mxu0 %v622
        %v892 = vpop.f32.mrb[0].mxu0
        %v893 = vadd.f32 %v681, %v892
        %v894 = vpop.f32.mrb[0].mxu0
        %v895 = vadd.f32 %v685, %v894
        %v896 = vpop.f32.mrb[0].mxu0
        %v897 = vadd.f32 %v681, %v896
        %v898 = vpop.f32.mrb[0].mxu0
        %v899 = vadd.f32 %v685, %v898
        %900 = vmatprep.mubr.bf16.mxu0 %v625
        %901 = vmatmul.mubr.bf16.gmra.mrb[0].mxu0 %v624
        %v902 = vpop.f32.mrb[0].mxu0
        %v903 = vadd.f32 %v681, %v902
        %v904 = vpop.f32.mrb[0].mxu0
        %v905 = vadd.f32 %v685, %v904
        %v906 = vpop.f32.mrb[0].mxu0
        %v907 = vadd.f32 %v681, %v906
        %v908 = vpop.f32.mrb[0].mxu0
        %v909 = vadd.f32 %v685, %v908
        %910 = vmatprep.mubr.bf16.mxu0 %v627
        %911 = vmatmul.mubr.bf16.gmra.mrb[0].mxu0 %v626
        %v912 = vpop.f32.mrb[0].mxu0
        %v913 = vadd.f32 %v681, %v912
        %v914 = vpop.f32.mrb[0].mxu0
        %v915 = vadd.f32 %v685, %v914
        %v916 = vpop.f32.mrb[0].mxu0
        %v917 = vadd.f32 %v681, %v916
        %v918 = vpop.f32.mrb[0].mxu0
        %v919 = vadd.f32 %v685, %v918
        %920 = vmatprep.mubr.bf16.mxu0 %v629
        %921 = vmatmul.mubr.bf16.gmra.mrb[0].mxu0 %v628
        %v922 = vpop.f32.mrb[0].mxu0
        %v923 = vadd.f32 %v681, %v922
        %v924 = vpop.f32.mrb[0].mxu0
        %v925 = vadd.f32 %v685, %v924
        %v926 = vpop.f32.mrb[0].mxu0
        %v927 = vadd.f32 %v681, %v926
        %v928 = vpop.f32.mrb[0].mxu0
        %v929 = vadd.f32 %v685, %v928
        %930 = vmatprep.mubr.bf16.mxu0 %v631
        %931 = vmatmul.mubr.bf16.gmra.mrb[0].mxu0 %v630
        %v932 = vpop.f32.mrb[0].mxu0
        %v933 = vadd.f32 %v681, %v932
        %v934 = vpop.f32.mrb[0].mxu0
        %v935 = vadd.f32 %v685, %v934
        %v936 = vpop.f32.mrb[0].mxu0
        %v937 = vadd.f32 %v681, %v936
        %v938 = vpop.f32.mrb[0].mxu0
        %v939 = vadd.f32 %v685, %v938
        %940 = vmatprep.mubr.bf16.mxu0 %v633
        %941 = vmatmul.mubr.bf16.gmra.mrb[0].mxu0 %v632
        %v942 = vpop.f32.mrb[0].mxu0
        %v943 = vadd.f32 %v681, %v942
        %v944 = vpop.f32.mrb[0].mxu0
        %v945 = vadd.f32 %v685, %v944
        %v946 = vpop.f32.mrb[0].mxu0
        %v947 = vadd.f32 %v681, %v946
        %v948 = vpop.f32.mrb[0].mxu0
        %v949 = vadd.f32 %v685, %v948
        %950 = vmatprep.mubr.bf16.mxu0 %v635
        %951 = vmatmul.mubr.bf16.gmra.mrb[0].mxu0 %v634
        %v952 = vpop.f32.mrb[0].mxu0
        %v953 = vadd.f32 %v681, %v952
        %v954 = vpop.f32.mrb[0].mxu0
        %v955 = vadd.f32 %v685, %v954
        %v956 = vpop.f32.mrb[0].mxu0
        %v957 = vadd.f32 %v681, %v956
        %v958 = vpop.f32.mrb[0].mxu0
        %v959 = vadd.f32 %v685, %v958
        %960 = vmatprep.mubr.bf16.mxu0 %v637
        %961 = vmatmul.mubr.bf16.gmra.mrb[0].mxu0 %v636
        %v962 = vpop.f32.mrb[0].mxu0
        %v963 = vadd.f32 %v681, %v962
        %v964 = vpop.f32.mrb[0].mxu0
        %v965 = vadd.f32 %v685, %v964
        %v966 = vpop.f32.mrb[0].mxu0
        %v967 = vadd.f32 %v681, %v966
        %v968 = vpop.f32.mrb[0].mxu0
        %v969 = vadd.f32 %v685, %v968
        %970 = vmatprep.mubr.bf16.mxu0 %v639
        %971 = vmatmul.mubr.bf16.gmra.mrb[0].mxu0 %v638
        %v972 = vpop.f32.mrb[0].mxu0
        %v973 = vadd.f32 %v681, %v972
        %v974 = vpop.f32.mrb[0].mxu0
        %v975 = vadd.f32 %v685, %v974
        %v976 = vpop.f32.mrb[0].mxu0
        %v977 = vadd.f32 %v681, %v976
        %v978 = vpop.f32.mrb[0].mxu0
        %v979 = vadd.f32 %v685, %v978
        %980 = vmatprep.mubr.bf16.mxu0 %v641
        %981 = vmatmul.mubr.bf16.gmra.mrb[0].mxu0 %v640
        %v982 = vpop.f32.mrb[0].mxu0
        %v983 = vadd.f32 %v681, %v982
        %v984 = vpop.f32.mrb[0].mxu0
        %v985 = vadd.f32 %v685, %v984
        %v986 = vpop.f32.mrb[0].mxu0
        %v987 = vadd.f32 %v681, %v986
        %v988 = vpop.f32.mrb[0].mxu0
        %v989 = vadd.f32 %v685, %v988
        %990 = vmatprep.mubr.bf16.mxu0 %v643
        %991 = vmatmul.mubr.bf16.gmra.mrb[0].mxu0 %v642
        %v992 = vpop.f32.mrb[0].mxu0
        %v993 = vadd.f32 %v681, %v992
        %v994 = vpop.f32.mrb[0].mxu0
        %v995 = vadd.f32 %v685, %v994
        %v996 = vpop.f32.mrb[0].mxu0
        %v997 = vadd.f32 %v681, %v996
        %v998 = vpop.f32.mrb[0].mxu0
        %v999 = vadd.f32 %v685, %v998
        %1000 = vdwg.mxu0
        %1001 = vst [vmem:[%s271] sm:$0xff] %v883
        %1002 = vst [vmem:[%s271 + $0x8] sm:$0xff] %v885
        %1003 = vst [vmem:[%s271 + $0x10] sm:$0xff] %v887
        %1004 = vst [vmem:[%s271 + $0x18] sm:$0xff] %v889
        %1005 = vst [vmem:[%s271 + $0x20] sm:$0xff] %v893
        %1006 = vst [vmem:[%s271 + $0x28] sm:$0xff] %v895
        %1007 = vst [vmem:[%s271 + $0x30] sm:$0xff] %v897
        %1008 = vst [vmem:[%s271 + $0x38] sm:$0xff] %v899
        %1009 = vst [vmem:[%s271 + $0x40] sm:$0xff] %v903
        %1010 = vst [vmem:[%s271 + $0x48] sm:$0xff] %v905
        %1011 = vst [vmem:[%s271 + $0x50] sm:$0xff] %v907
        %1012 = vst [vmem:[%s271 + $0x58] sm:$0xff] %v909
        %1013 = vst [vmem:[%s271 + $0x60] sm:$0xff] %v913
        %1014 = vst [vmem:[%s271 + $0x68] sm:$0xff] %v915
        %1015 = vst [vmem:[%s271 + $0x70] sm:$0xff] %v917
        %1016 = vst [vmem:[%s271 + $0x78] sm:$0xff] %v919
        %1017 = vst [vmem:[%s271 + $0x80] sm:$0xff] %v923
        %1018 = vst [vmem:[%s271 + $0x88] sm:$0xff] %v925
        %1019 = vst [vmem:[%s271 + $0x90] sm:$0xff] %v927
        %1020 = vst [vmem:[%s271 + $0x98] sm:$0xff] %v929
        %1021 = vst [vmem:[%s271 + $0xa0] sm:$0xff] %v933
        %1022 = vst [vmem:[%s271 + $0xa8] sm:$0xff] %v935
        %1023 = vst [vmem:[%s271 + $0xb0] sm:$0xff] %v937
        %1024 = vst [vmem:[%s271 + $0xb8] sm:$0xff] %v939
        %1025 = vst [vmem:[%s271 + $0xc0] sm:$0xff] %v943
        %1026 = vst [vmem:[%s271 + $0xc8] sm:$0xff] %v945
        %1027 = vst [vmem:[%s271 + $0xd0] sm:$0xff] %v947
        %1028 = vst [vmem:[%s271 + $0xd8] sm:$0xff] %v949
        %1029 = vst [vmem:[%s271 + $0xe0] sm:$0xff] %v953
        %1030 = vst [vmem:[%s271 + $0xe8] sm:$0xff] %v955
        %1031 = vst [vmem:[%s271 + $0xf0] sm:$0xff] %v957
        %1032 = vst [vmem:[%s271 + $0xf8] sm:$0xff] %v959
        %1033 = vst [vmem:[%s271 + $0x100] sm:$0xff] %v963
        %1034 = vst [vmem:[%s271 + $0x108] sm:$0xff] %v965
        %1035 = vst [vmem:[%s271 + $0x110] sm:$0xff] %v967
        %1036 = vst [vmem:[%s271 + $0x118] sm:$0xff] %v969
        %1037 = vst [vmem:[%s271 + $0x120] sm:$0xff] %v973
        %1038 = vst [vmem:[%s271 + $0x128] sm:$0xff] %v975
        %1039 = vst [vmem:[%s271 + $0x130] sm:$0xff] %v977
        %1040 = vst [vmem:[%s271 + $0x138] sm:$0xff] %v979
        %1041 = vst [vmem:[%s271 + $0x140] sm:$0xff] %v983
        %1042 = vst [vmem:[%s271 + $0x148] sm:$0xff] %v985
        %1043 = vst [vmem:[%s271 + $0x150] sm:$0xff] %v987
        %1044 = vst [vmem:[%s271 + $0x158] sm:$0xff] %v989
        %1045 = vst [vmem:[%s271 + $0x160] sm:$0xff] %v993
        %1046 = vst [vmem:[%s271 + $0x168] sm:$0xff] %v995
        %1047 = vst [vmem:[%s271 + $0x170] sm:$0xff] %v997
        %1048 = vst [vmem:[%s271 + $0x178] sm:$0xff] %v999
        %s1049 = sand.u32 %s141, 1
        %s1050 = scalar_lea.sflag [#allocation4], %s1049
        %s1051 = sand.u32 %s141, 1
        %s1052 = smul.addr %s1051, 384
        %s1053 = scalar_lea.vmem [#allocation8], %s1052
        // Predicated region
        $region53: #{tpu_custom_call.1} parent=39 // pred_check
          %p1054 = pneg %p151
        $region54: #{tpu_custom_call.1} parent=39 // pred_check_branch
          %1056 = sbr.rel (%p1054) target = $region56
        $region55: #{tpu_custom_call.1} parent=39 // pred_region
          %s1057 = smul.u32 24, %s23
          %s1059 = ssub.s32 6144, 6144
          %1060 = vsyncadd %s1050, %s1059
          %s1061 = smul.addr %s1057, 2
          %s1062 = smul.addr %s1061, 128
          %s1063 = scalar_lea.hbm %s5, %s1062
          %s1064 = sshll.u32 %s1053, 4
          %s1065 = int_to_ptr.vmem [resolvable:$true] %s1064
          %1070 = dma.vmem_to_hbm [thread:$0]  %s1065, 6144, %s1063, %s1050, 256, 256, 16
        $region56: #{tpu_custom_call.1} parent=39 // pred_fallthru
          _
      $region40: #{tpu_custom_call.1} parent=5 // pred_fallthru
        _
      %p1071 = scmp.le.s32.totalorder 2, %s18
      // Predicated region
      $region57: #{tpu_custom_call.1} parent=5 // pred_check
        %p1072 = pneg %p1071
      $region58: #{tpu_custom_call.1} parent=5 // pred_check_branch
        %1074 = sbr.rel (%p1072) target = $region60
      $region59: #{tpu_custom_call.1} parent=5 // pred_region
        %s1075 = ssub.s32 %s18, 2
        // Predicated region
        $region61: #{tpu_custom_call.1} parent=59 // pred_check
          %p1076 = pneg %p157
        $region62: #{tpu_custom_call.1} parent=59 // pred_check_branch
          %1078 = sbr.rel (%p1076) target = $region64
        $region63: #{tpu_custom_call.1} parent=59 // pred_region
          %s1079 = sand.u32 %s142, 1
          %s1080 = scalar_lea.sflag [#allocation4], %s1079
          %s1081 = sand.u32 %s142, 1
          %s1082 = smul.addr %s1081, 384
          %s1083 = scalar_lea.vmem [#allocation8], %s1082
          %1084 = dma.done %s1080, 6144
        $region64: #{tpu_custom_call.1} parent=59 // pred_fallthru
          _
      $region60: #{tpu_custom_call.1} parent=5 // pred_fallthru
        _
    $region6: #{tpu_custom_call.1} parent=1 // loop_footer
      %s22 = sadd.s32 1, %s18
    $region7: #{tpu_custom_call.1} parent=1 // loop_footer_branch
      %17 = sbr.rel target = $region3
    $region8: #{tpu_custom_call.1} parent=1 // loop_exit
      _
    %1085 = vsyncpa [#allocation3], 1
    %s1086 = scalar_lea.sflag [#allocation3], 1
    %1087 = vsyncpa %s1086, 1
    %1088 = vsyncpa [#allocation6], 1
    %1089 = vsyncpa [#allocation4], 1
    %s1090 = scalar_lea.sflag [#allocation4], 1
    %1091 = vsyncpa %s1090, 1

</llo_original>
